<compile_context>
chip_gen: v7x
topology: tpu7x:2x2x1
jax: 0.10.0
libtpu: 0.0.40
codegen_flags: <defaults>
</compile_context>

<pallas_src>
import functools
import math

import jax
import jax.numpy as jnp
from jax import lax
from jax.experimental import pallas as pl
from jax.experimental.pallas import tpu as pltpu

LN_EPS = 1e-5                # PyTorch nn.LayerNorm default
F32 = jnp.float32
BF16 = jnp.bfloat16
NEG_BIG = -1e30              # finite "-inf" -> no inf-inf NaNs in online softmax

# tile targets (small dims fall back to full-array blocks, which are always legal)
TM = 512       # row tile for streamed matmuls
TN = 1024      # output-column tile
TK = 512       # contraction tile
TM_LN = 512    # row tile for standalone layernorm
TQ_ATTN = 256  # query / kv tile for attention


@functools.lru_cache(maxsize=None)
def _vmem_limit_bytes():
    """Generation-dependent scoped-VMEM budget (~85% of physical, capped)."""
    try:
        cap = int(pltpu.get_tpu_info().vmem_capacity_bytes)
        return max(32 << 20, min(int(cap * 0.85), 112 << 20))
    except Exception:
        return 48 << 20      # safe default on v5e/v6e/v7x


@functools.lru_cache(maxsize=None)
def _is_v5e():
    try:
        kind = jax.devices()[0].device_kind.lower()
        return ("v5e" in kind) or ("v5 lite" in kind) or ("v5litepod" in kind)
    except Exception:
        return False


def _cparams(dims):
    return pltpu.CompilerParams(dimension_semantics=dims,
                                vmem_limit_bytes=_vmem_limit_bytes())


def _tile(dim, target, align):
    """(tile, padded_dim).  dim<=target -> full-dim block (always legal, no pad);
    otherwise an aligned tile and the dim padded up to a tile multiple.  Never
    falls back to a huge full-dim block (the vocab=50257 VMEM cliff)."""
    if dim <= target:
        return dim, dim
    tile = max(align, (target // align) * align)
    padded = ((dim + tile - 1) // tile) * tile
    return tile, padded


def _pad_axis(x, axis, to):
    if x.shape[axis] == to:
        return x
    widths = [(0, 0)] * x.ndim
    widths[axis] = (0, to - x.shape[axis])
    return jnp.pad(x, widths)


# ----------------------------- linear kernels ------------------------------

def _linear_kernel(x_ref, w_ref, b_ref, o_ref, acc_ref, *, act):
    @pl.when(pl.program_id(2) == 0)
    def _():
        acc_ref[...] = jnp.zeros_like(acc_ref)

    acc_ref[...] += jnp.dot(x_ref[...], w_ref[...], preferred_element_type=F32)

    @pl.when(pl.program_id(2) == pl.num_programs(2) - 1)
    def _():
        out = acc_ref[...] + b_ref[...]
        if act == "relu":
            out = jnp.maximum(out, 0.0)
        o_ref[...] = out.astype(o_ref.dtype)


def _weight_spec(tk, tn):
    idx = lambda i, j, k: (k, j)
    if _is_v5e():
        try:   # deeper weight buffering hides exposed weight-tile DMA on v5e HBM
            return pl.BlockSpec((tk, tn), idx, pipeline_mode=pl.Buffered(3))
        except Exception:
            pass
    return pl.BlockSpec((tk, tn), idx)


def linear(x, w, b, act=None, out_dtype=BF16):
    """x:[N,K](bf16) @ w:[K,M](bf16) + b:[1,M](f32), optional ReLU, f32 accumulation."""
    N, K = x.shape
    M = w.shape[1]
    tm, Np = _tile(N, TM, 16)       # 16-aligned rows for bf16 sublane packing
    tn, Mp = _tile(M, TN, 128)
    tk, Kp = _tile(K, TK, 128)
    xp = _pad_axis(_pad_axis(x, 0, Np), 1, Kp)
    wp = _pad_axis(_pad_axis(w, 0, Kp), 1, Mp)
    bp = _pad_axis(b, 1, Mp)
    grid = (Np // tm, Mp // tn, Kp // tk)
    out = pl.pallas_call(
        functools.partial(_linear_kernel, act=act),
        out_shape=jax.ShapeDtypeStruct((Np, Mp), out_dtype),
        grid=grid,
        in_specs=[
            pl.BlockSpec((tm, tk), lambda i, j, k: (i, k)),
            _weight_spec(tk, tn),
            pl.BlockSpec((1, tn), lambda i, j, k: (0, j)),
        ],
        out_specs=pl.BlockSpec((tm, tn), lambda i, j, k: (i, j)),
        scratch_shapes=[pltpu.VMEM((tm, tn), F32)],
        compiler_params=_cparams(("parallel", "parallel", "arbitrary")),
    )(xp, wp, bp)
    if (Np, Mp) != (N, M):
        out = out[:N, :M]
    return out


def _ln_math(y, g, b):
    mu = jnp.mean(y, axis=-1, keepdims=True)
    d = y - mu
    var = jnp.mean(d * d, axis=-1, keepdims=True)
    return d * lax.rsqrt(var + LN_EPS) * g + b


def _linear_res_ln_kernel(x_ref, w_ref, b_ref, r_ref, g_ref, beta_ref, o_ref, acc_ref):
    @pl.when(pl.program_id(1) == 0)
    def _():
        acc_ref[...] = jnp.zeros_like(acc_ref)

    acc_ref[...] += jnp.dot(x_ref[...], w_ref[...], preferred_element_type=F32)

    @pl.when(pl.program_id(1) == pl.num_programs(1) - 1)
    def _():
        y = acc_ref[...] + b_ref[...] + r_ref[...].astype(F32)
        o_ref[...] = _ln_math(y, g_ref[...], beta_ref[...]).astype(o_ref.dtype)


def _fused_ln_row_target(E):
    # Full-E output columns -> (tm,E) f32 acc + (tk,E) weights + (tm,E) residual
    # double-buffered; shrink rows as E grows so v7x's 64 MiB VMEM is safe.
    if E >= 8192:
        return 64
    if E >= 4096:
        return 128
    if E >= 2048:
        return 256
    return TM


def linear_residual_ln(x, w, b, res, g, beta, out_dtype=BF16):
    """Fused: LayerNorm(res + x @ w + b).  Output columns are the full model dim."""
    N, K = x.shape
    E = w.shape[1]
    tm, Np = _tile(N, _fused_ln_row_target(E), 16)
    tk, Kp = _tile(K, TK, 128)
    xp = _pad_axis(_pad_axis(x, 0, Np), 1, Kp)
    wp = _pad_axis(w, 0, Kp)
    rp = _pad_axis(res, 0, Np)
    grid = (Np // tm, Kp // tk)
    out = pl.pallas_call(
        _linear_res_ln_kernel,
        out_shape=jax.ShapeDtypeStruct((Np, E), out_dtype),
        grid=grid,
        in_specs=[
            pl.BlockSpec((tm, tk), lambda i, k: (i, k)),
            pl.BlockSpec((tk, E), lambda i, k: (k, 0)),
            pl.BlockSpec((1, E), lambda i, k: (0, 0)),
            pl.BlockSpec((tm, E), lambda i, k: (i, 0)),
            pl.BlockSpec((1, E), lambda i, k: (0, 0)),
            pl.BlockSpec((1, E), lambda i, k: (0, 0)),
        ],
        out_specs=pl.BlockSpec((tm, E), lambda i, k: (i, 0)),
        scratch_shapes=[pltpu.VMEM((tm, E), F32)],
        compiler_params=_cparams(("parallel", "arbitrary")),
    )(xp, wp, b, rp, g, beta)
    return out[:N] if Np != N else out


def _ln_kernel(x_ref, g_ref, b_ref, o_ref):
    o_ref[...] = _ln_math(x_ref[...].astype(F32), g_ref[...], b_ref[...]).astype(o_ref.dtype)


def layernorm(x, g, b, out_dtype=BF16):
    N, E = x.shape
    tm, Np = _tile(N, TM_LN, 16)
    xp = _pad_axis(x, 0, Np)
    out = pl.pallas_call(
        _ln_kernel,
        out_shape=jax.ShapeDtypeStruct((Np, E), out_dtype),
        grid=(Np // tm,),
        in_specs=[
            pl.BlockSpec((tm, E), lambda i: (i, 0)),
            pl.BlockSpec((1, E), lambda i: (0, 0)),
            pl.BlockSpec((1, E), lambda i: (0, 0)),
        ],
        out_specs=pl.BlockSpec((tm, E), lambda i: (i, 0)),
        compiler_params=_cparams(("parallel",)),
    )(xp, g, b)
    return out[:N] if Np != N else out


# ----------------------------- attention ------------------------------------

def _flash_attn_kernel(q_ref, k_ref, v_ref, o_ref, m_sc, l_sc, acc_sc, *, scale, tq, tk):
    qi = pl.program_id(2)
    ki = pl.program_id(3)

    @pl.when(ki == 0)
    def _():
        m_sc[...] = jnp.full_like(m_sc, NEG_BIG)
        l_sc[...] = jnp.zeros_like(l_sc)
        acc_sc[...] = jnp.zeros_like(acc_sc)

    # Skip KV blocks strictly above the causal diagonal band.
    @pl.when(ki * tk <= qi * tq + (tq - 1))
    def _():
        q = q_ref[0, 0]                                   # (tq, Dh) bf16
        k = k_ref[0, 0]                                   # (tk, Dh) bf16
        v = v_ref[0, 0]
        s = lax.dot_general(q, k, (((1,), (1,)), ((), ())),
                            preferred_element_type=F32) * scale
        row = qi * tq + lax.broadcasted_iota(jnp.int32, (tq, tk), 0)
        col = ki * tk + lax.broadcasted_iota(jnp.int32, (tq, tk), 1)
        s = jnp.where(col <= row, s, NEG_BIG)             # causal mask, no [T,T] HBM buffer
        m_new = jnp.maximum(m_sc[...], jnp.max(s, axis=-1, keepdims=True))
        alpha = jnp.exp(m_sc[...] - m_new)
        p = jnp.exp(s - m_new)
        l_sc[...] = alpha * l_sc[...] + jnp.sum(p, axis=-1, keepdims=True)
        acc_sc[...] = alpha * acc_sc[...] + jnp.dot(p.astype(v.dtype), v,
                                                    preferred_element_type=F32)
        m_sc[...] = m_new

    @pl.when(ki == pl.num_programs(3) - 1)
    def _():
        o_ref[0, 0] = (acc_sc[...] *
                       pl.reciprocal(l_sc[...], approx=False)).astype(o_ref.dtype)


def attention(q, k, v):
    """Causal MHA core.  q,k,v: [B, H, T, Dh] bf16 -> [B, H, T, Dh] bf16.
    Flash-style: O(T*tile) VMEM footprint, softmax stats in f32 scratch."""
    B, H, T, Dh = q.shape
    scale = 1.0 / math.sqrt(Dh)
    tq, Tp = _tile(T, TQ_ATTN, 16)
    tk = tq
    if Tp != T:
        # Padded key rows sit above the causal diagonal for every real query row,
        # so they are masked out; padded query rows are sliced off below.
        q = _pad_axis(q, 2, Tp)
        k = _pad_axis(k, 2, Tp)
        v = _pad_axis(v, 2, Tp)
    nq, nk = Tp // tq, Tp // tk
    out = pl.pallas_call(
        functools.partial(_flash_attn_kernel, scale=scale, tq=tq, tk=tk),
        out_shape=jax.ShapeDtypeStruct((B, H, Tp, Dh), BF16),
        grid=(B, H, nq, nk),
        in_specs=[
            pl.BlockSpec((1, 1, tq, Dh), lambda b, h, i, j: (b, h, i, 0)),
            pl.BlockSpec((1, 1, tk, Dh), lambda b, h, i, j: (b, h, j, 0)),
            pl.BlockSpec((1, 1, tk, Dh), lambda b, h, i, j: (b, h, j, 0)),
        ],
        out_specs=pl.BlockSpec((1, 1, tq, Dh), lambda b, h, i, j: (b, h, i, 0)),
        scratch_shapes=[pltpu.VMEM((tq, 1), F32),       # running max
                        pltpu.VMEM((tq, 1), F32),       # running denom
                        pltpu.VMEM((tq, Dh), F32)],     # running numerator
        compiler_params=_cparams(("parallel", "parallel", "parallel", "arbitrary")),
    )(q, k, v)
    if Tp != T:
        out = out[:, :, :T]
    return out


# ----------------------------- parameters ----------------------------------

def init_params(key, vocab, E, L, block_size):
    def nxt():
        nonlocal key
        key, sub = jax.random.split(key)
        return sub

    std = 0.02
    wgt = lambda shape: (jax.random.normal(nxt(), shape, F32) * std).astype(BF16)
    bias = lambda shape: jax.random.normal(nxt(), shape, F32) * std

    p = {
        "tok_emb": jax.random.normal(nxt(), (vocab, E), F32) * std,
        "pos_emb": jax.random.normal(nxt(), (block_size, E), F32) * std,
        "lnf_g": jnp.ones((1, E), F32),
        "lnf_b": jnp.zeros((1, E), F32),
        "head_w": wgt((E, vocab)),        # pre-transposed [in, out]
        "head_b": bias((1, vocab)),
        "layers": [],
    }
    for _ in range(L):
        p["layers"].append({
            "in_proj_w": wgt((E, 3 * E)),   # nn.MultiheadAttention in_proj, [in, out]
            "in_proj_b": bias((1, 3 * E)),
            "out_proj_w": wgt((E, E)),
            "out_proj_b": bias((1, E)),
            "ln1_g": jnp.ones((1, E), F32),
            "ln1_b": jnp.zeros((1, E), F32),
            "ff1_w": wgt((E, 4 * E)),
            "ff1_b": bias((1, 4 * E)),
            "ff2_w": wgt((4 * E, E)),
            "ff2_b": bias((1, E)),
            "ln2_g": jnp.ones((1, E), F32),
            "ln2_b": jnp.zeros((1, E), F32),
        })
    return p


# ----------------------------- forward pass ---------------------------------

def forward(params, idx, n_head):
    """Equivalent of TransformerLanguageModel.forward(idx, targets=None)."""
    B, T = idx.shape
    E = params["tok_emb"].shape[1]
    Dh = E // n_head

    # Embedding lookups (gather) are glue; kept in plain JAX.
    tok = jnp.take(params["tok_emb"], idx, axis=0)          # [B, T, E] f32
    pos = params["pos_emb"][:T]                              # [T, E] f32
    h = (tok + pos[None]).reshape(B * T, E).astype(BF16)     # bf16 activations

    # TODO(synk): dropout is identity in eval / p=0; training-mode dropout not modeled.
    for lyr in params["layers"]:
        # --- self-attention block (post-norm, TransformerEncoderLayer default) ---
        qkv = linear(h, lyr["in_proj_w"], lyr["in_proj_b"])          # [B*T, 3E]
        # TODO(synk): in_proj could be fused into the attention kernel via emit_pipeline
        #             to avoid this [B*T,3E] HBM round trip (structural follow-up).
        qkv5 = qkv.reshape(B, T, 3, n_head, Dh)
        q = jnp.transpose(qkv5[:, :, 0], (0, 2, 1, 3))               # [B, H, T, Dh]
        k = jnp.transpose(qkv5[:, :, 1], (0, 2, 1, 3))
        v = jnp.transpose(qkv5[:, :, 2], (0, 2, 1, 3))
        attn = attention(q, k, v)                                     # [B, H, T, Dh]
        attn = jnp.transpose(attn, (0, 2, 1, 3)).reshape(B * T, E)
        h = linear_residual_ln(attn, lyr["out_proj_w"], lyr["out_proj_b"],
                               h, lyr["ln1_g"], lyr["ln1_b"])         # fused out_proj+add+LN

        # --- feed-forward block ---
        ff = linear(h, lyr["ff1_w"], lyr["ff1_b"], act="relu")        # [B*T, 4E]
        h = linear_residual_ln(ff, lyr["ff2_w"], lyr["ff2_b"],
                               h, lyr["ln2_g"], lyr["ln2_b"])         # fused ff2+add+LN

    h = layernorm(h, params["lnf_g"], params["lnf_b"])
    # bf16 logits (f32 accumulation): halves the largest HBM writeback.
    logits = linear(h, params["head_w"], params["head_b"], out_dtype=BF16)
    return logits.reshape(B, T, -1), None


# ----------------------------- pure-JAX reference ---------------------------
# Mirrors the exact bf16 cast points of the Pallas path so the comparison is tight.

def reference_forward(params, idx, n_head):
    B, T = idx.shape
    E = params["tok_emb"].shape[1]
    Dh = E // n_head

    def ln(y, g, b):
        mu = jnp.mean(y, -1, keepdims=True)
        d = y - mu
        var = jnp.mean(d * d, -1, keepdims=True)
        return d * lax.rsqrt(var + LN_EPS) * g + b

    def mm(a, w):
        return jnp.dot(a, w, preferred_element_type=F32)

    tok = jnp.take(params["tok_emb"], idx, axis=0)
    h = (tok + params["pos_emb"][:T][None]).reshape(B * T, E).astype(BF16)
    mask = jnp.where(jnp.triu(jnp.ones((T, T), F32), 1) > 0, -1e30, 0.0).astype(F32)

    for lyr in params["layers"]:
        qkv = (mm(h, lyr["in_proj_w"]) + lyr["in_proj_b"]).astype(BF16)
        q, k, v = jnp.split(qkv.reshape(B, T, 3 * E), 3, axis=-1)
        heads = lambda t: t.reshape(B, T, n_head, Dh).transpose(0, 2, 1, 3)
        q, k, v = heads(q), heads(k), heads(v)
        s = jnp.einsum("bhqd,bhkd->bhqk", q, k,
                       preferred_element_type=F32) / math.sqrt(Dh) + mask
        p = jax.nn.softmax(s, axis=-1)
        a = jnp.einsum("bhqk,bhkd->bhqd", p.astype(BF16), v,
                       preferred_element_type=F32)
        a = a.transpose(0, 2, 1, 3).reshape(B * T, E).astype(BF16)
        y = mm(a, lyr["out_proj_w"]) + lyr["out_proj_b"] + h.astype(F32)
        h = ln(y, lyr["ln1_g"], lyr["ln1_b"]).astype(BF16)
        f = jnp.maximum(mm(h, lyr["ff1_w"]) + lyr["ff1_b"], 0.0).astype(BF16)
        y = mm(f, lyr["ff2_w"]) + lyr["ff2_b"] + h.astype(F32)
        h = ln(y, lyr["ln2_g"], lyr["ln2_b"]).astype(BF16)

    hf = ln(h.astype(F32), params["lnf_g"], params["lnf_b"]).astype(BF16)
    logits = mm(hf, params["head_w"]) + params["head_b"]
    return logits.reshape(B, T, -1)


# ----------------------------- main ------------------------------------------

if __name__ == "__main__":
    vocab_size, n_embd, n_head, n_layer, block_size = 64, 32, 4, 2, 8
    B, T = 2, 8

    key = jax.random.PRNGKey(0)
    pkey, ikey = jax.random.split(key)
    params = init_params(pkey, vocab_size, n_embd, n_layer, block_size)
    idx = jax.random.randint(ikey, (B, T), 0, vocab_size, dtype=jnp.int32)

    fwd = jax.jit(forward, static_argnums=2)
    logits, loss = fwd(params, idx, n_head)
    logits = jax.block_until_ready(logits)
    assert logits.shape == (B, T, vocab_size)
    assert loss is None

    ref = jax.block_until_ready(reference_forward(params, idx, n_head))
    assert jnp.allclose(logits.astype(F32), ref.astype(F32), atol=2e-2, rtol=2e-2), \
        "mismatch vs pure-JAX reference"

    print("KERNEL_OK")
</pallas_src>

<mosaic_0001>
module attributes {stable_mosaic.version = 11 : i64} {
  func.func @_linear_kernel(%arg0: i32, %arg1: i32, %arg2: i32, %arg3: memref<16x32xbf16, #tpu.memory_space<vmem>>, %arg4: memref<32x96xbf16, #tpu.memory_space<vmem>>, %arg5: memref<1x96xf32, #tpu.memory_space<vmem>>, %arg6: memref<16x96xbf16, #tpu.memory_space<vmem>>, %arg7: memref<16x96xf32, #tpu.memory_space<vmem>>) attributes {dimension_semantics = [#tpu.dimension_semantics<parallel>, #tpu.dimension_semantics<parallel>, #tpu.dimension_semantics<arbitrary>], iteration_bounds = array<i64: 1, 1, 1>, scalar_prefetch = 0 : i64, scratch_operands = 1 : i64, tpu.core_type = #tpu.core_type<tc>, window_params = [{transform_indices = @transform_0, window_bounds = array<i64: 16, 32>}, {transform_indices = @transform_1, window_bounds = array<i64: 32, 96>}, {transform_indices = @transform_2, window_bounds = array<i64: 1, 96>}, {transform_indices = @transform_3, window_bounds = array<i64: 16, 96>}]} {
    %c0_i32 = arith.constant 0 : i32
    %0 = arith.cmpi eq, %arg2, %c0_i32 : i32
    %1 = arith.extui %0 : i1 to i32
    %c0_i32_0 = arith.constant 0 : i32
    %2 = arith.cmpi ne, %1, %c0_i32_0 : i32
    scf.if %2 {
      %cst_10 = arith.constant 0.000000e+00 : f32
      %12 = vector.broadcast %cst_10 : f32 to vector<16x96xf32>
      %c0_11 = arith.constant 0 : index
      %c0_12 = arith.constant 0 : index
      %13 = vector.load %arg7[%c0_11, %c0_12] : memref<16x96xf32, #tpu.memory_space<vmem>>, vector<16x96xf32>
      tpu.vector_store %arg7[%c0_11, %c0_12], %12 {strides = array<i32>} : memref<16x96xf32, #tpu.memory_space<vmem>>, vector<16x96xf32>,
    } else {
    }
    %c0 = arith.constant 0 : index
    %c0_1 = arith.constant 0 : index
    %3 = vector.load %arg7[%c0, %c0_1] : memref<16x96xf32, #tpu.memory_space<vmem>>, vector<16x96xf32>
    %c0_2 = arith.constant 0 : index
    %c0_3 = arith.constant 0 : index
    %4 = vector.load %arg3[%c0_2, %c0_3] : memref<16x32xbf16, #tpu.memory_space<vmem>>, vector<16x32xbf16>
    %c0_4 = arith.constant 0 : index
    %c0_5 = arith.constant 0 : index
    %5 = vector.load %arg4[%c0_4, %c0_5] : memref<32x96xbf16, #tpu.memory_space<vmem>>, vector<32x96xbf16>
    %cst = arith.constant dense<0.000000e+00> : vector<16x96xf32>
    %6 = tpu.matmul %4, %5, %cst {dimension_numbers = #tpu.dot_dimension_numbers<[1], [0], [0], [1], [0, 0, 1, 1], [], []>} : vector<16x32xbf16>, vector<32x96xbf16>, vector<16x96xf32> -> vector<16x96xf32>
    %7 = arith.addf %3, %6 : vector<16x96xf32>
    %c0_6 = arith.constant 0 : index
    %c0_7 = arith.constant 0 : index
    %8 = vector.load %arg7[%c0_6, %c0_7] : memref<16x96xf32, #tpu.memory_space<vmem>>, vector<16x96xf32>
    tpu.vector_store %arg7[%c0_6, %c0_7], %7 {strides = array<i32>} : memref<16x96xf32, #tpu.memory_space<vmem>>, vector<16x96xf32>,
    %c0_i32_8 = arith.constant 0 : i32
    %9 = arith.cmpi eq, %arg2, %c0_i32_8 : i32
    %10 = arith.extui %9 : i1 to i32
    %c0_i32_9 = arith.constant 0 : i32
    %11 = arith.cmpi ne, %10, %c0_i32_9 : i32
    scf.if %11 {
      %c0_10 = arith.constant 0 : index
      %c0_11 = arith.constant 0 : index
      %12 = vector.load %arg7[%c0_10, %c0_11] : memref<16x96xf32, #tpu.memory_space<vmem>>, vector<16x96xf32>
      %c0_12 = arith.constant 0 : index
      %c0_13 = arith.constant 0 : index
      %13 = vector.load %arg5[%c0_12, %c0_13] : memref<1x96xf32, #tpu.memory_space<vmem>>, vector<1x96xf32>
      %14 = vector.broadcast %13 : vector<1x96xf32> to vector<16x96xf32>
      %15 = arith.addf %12, %14 : vector<16x96xf32>
      %16 = arith.truncf %15 : vector<16x96xf32> to vector<16x96xbf16>
      %c0_14 = arith.constant 0 : index
      %c0_15 = arith.constant 0 : index
      %17 = vector.load %arg6[%c0_14, %c0_15] : memref<16x96xbf16, #tpu.memory_space<vmem>>, vector<16x96xbf16>
      tpu.vector_store %arg6[%c0_14, %c0_15], %16 {strides = array<i32>} : memref<16x96xbf16, #tpu.memory_space<vmem>>, vector<16x96xbf16>,
    } else {
    }
    return
  }
  func.func @transform_0(%arg0: i32, %arg1: i32, %arg2: i32) -> (i32, i32) {
    %c0_i32 = arith.constant 0 : i32
    return %arg0, %arg2 : i32, i32
  }
  func.func @transform_1(%arg0: i32, %arg1: i32, %arg2: i32) -> (i32, i32) {
    %c0_i32 = arith.constant 0 : i32
    return %arg2, %arg1 : i32, i32
  }
  func.func @transform_2(%arg0: i32, %arg1: i32, %arg2: i32) -> (i32, i32) {
    %c0_i32 = arith.constant 0 : i32
    %c0_i32_0 = arith.constant 0 : i32
    return %c0_i32, %arg1 : i32, i32
  }
  func.func @transform_3(%arg0: i32, %arg1: i32, %arg2: i32) -> (i32, i32) {
    %c0_i32 = arith.constant 0 : i32
    return %arg0, %arg1 : i32, i32
  }
}

module attributes {stable_mosaic.version = 11 : i64} {
  func.func @_flash_attn_kernel(%arg0: i32, %arg1: i32, %arg2: i32, %arg3: i32, %arg4: memref<1x1x8x8xbf16, #tpu.memory_space<vmem>>, %arg5: memref<1x1x8x8xbf16, #tpu.memory_space<vmem>>, %arg6: memref<1x1x8x8xbf16, #tpu.memory_space<vmem>>, %arg7: memref<1x1x8x8xbf16, #tpu.memory_space<vmem>>, %arg8: memref<8x1xf32, #tpu.memory_space<vmem>>, %arg9: memref<8x1xf32, #tpu.memory_space<vmem>>, %arg10: memref<8x8xf32, #tpu.memory_space<vmem>>) attributes {dimension_semantics = [#tpu.dimension_semantics<parallel>, #tpu.dimension_semantics<parallel>, #tpu.dimension_semantics<parallel>, #tpu.dimension_semantics<arbitrary>], iteration_bounds = array<i64: 2, 4, 1, 1>, scalar_prefetch = 0 : i64, scratch_operands = 3 : i64, tpu.core_type = #tpu.core_type<tc>, window_params = [{transform_indices = @transform_0, window_bounds = array<i64: 1, 1, 8, 8>}, {transform_indices = @transform_1, window_bounds = array<i64: 1, 1, 8, 8>}, {transform_indices = @transform_2, window_bounds = array<i64: 1, 1, 8, 8>}, {transform_indices = @transform_3, window_bounds = array<i64: 1, 1, 8, 8>}]} {
    %c0_i32 = arith.constant 0 : i32
    %0 = arith.cmpi eq, %arg3, %c0_i32 : i32
    %1 = arith.extui %0 : i1 to i32
    %c0_i32_0 = arith.constant 0 : i32
    %2 = arith.cmpi ne, %1, %c0_i32_0 : i32
    scf.if %2 {
      %cst = arith.constant -1.000000e+30 : f32
      %12 = vector.broadcast %cst : f32 to vector<8x1xf32>
      %c0 = arith.constant 0 : index
      %c0_5 = arith.constant 0 : index
      %13 = vector.load %arg8[%c0, %c0_5] : memref<8x1xf32, #tpu.memory_space<vmem>>, vector<8x1xf32>
      tpu.vector_store %arg8[%c0, %c0_5], %12 {strides = array<i32>} : memref<8x1xf32, #tpu.memory_space<vmem>>, vector<8x1xf32>,
      %cst_6 = arith.constant 0.000000e+00 : f32
      %14 = vector.broadcast %cst_6 : f32 to vector<8x1xf32>
      %c0_7 = arith.constant 0 : index
      %c0_8 = arith.constant 0 : index
      %15 = vector.load %arg9[%c0_7, %c0_8] : memref<8x1xf32, #tpu.memory_space<vmem>>, vector<8x1xf32>
      tpu.vector_store %arg9[%c0_7, %c0_8], %14 {strides = array<i32>} : memref<8x1xf32, #tpu.memory_space<vmem>>, vector<8x1xf32>,
      %cst_9 = arith.constant 0.000000e+00 : f32
      %16 = vector.broadcast %cst_9 : f32 to vector<8x8xf32>
      %c0_10 = arith.constant 0 : index
      %c0_11 = arith.constant 0 : index
      %17 = vector.load %arg10[%c0_10, %c0_11] : memref<8x8xf32, #tpu.memory_space<vmem>>, vector<8x8xf32>
      tpu.vector_store %arg10[%c0_10, %c0_11], %16 {strides = array<i32>} : memref<8x8xf32, #tpu.memory_space<vmem>>, vector<8x8xf32>,
    } else {
    }
    %c8_i32 = arith.constant 8 : i32
    %3 = arith.muli %arg3, %c8_i32 : i32
    %c8_i32_1 = arith.constant 8 : i32
    %4 = arith.muli %arg2, %c8_i32_1 : i32
    %c7_i32 = arith.constant 7 : i32
    %5 = arith.addi %4, %c7_i32 : i32
    %6 = arith.cmpi sle, %3, %5 : i32
    %7 = arith.extui %6 : i1 to i32
    %c0_i32_2 = arith.constant 0 : i32
    %8 = arith.cmpi ne, %7, %c0_i32_2 : i32
    scf.if %8 {
      %c0 = arith.constant 0 : index
      %c0_5 = arith.constant 0 : index
      %c0_6 = arith.constant 0 : index
      %c0_7 = arith.constant 0 : index
      %12 = vector.load %arg4[%c0, %c0_5, %c0_6, %c0_7] : memref<1x1x8x8xbf16, #tpu.memory_space<vmem>>, vector<1x1x8x8xbf16>
      %13 = vector.shape_cast %12 : vector<1x1x8x8xbf16> to vector<8x8xbf16>
      %c0_8 = arith.constant 0 : index
      %c0_9 = arith.constant 0 : index
      %c0_10 = arith.constant 0 : index
      %c0_11 = arith.constant 0 : index
      %14 = vector.load %arg5[%c0_8, %c0_9, %c0_10, %c0_11] : memref<1x1x8x8xbf16, #tpu.memory_space<vmem>>, vector<1x1x8x8xbf16>
      %15 = vector.shape_cast %14 : vector<1x1x8x8xbf16> to vector<8x8xbf16>
      %c0_12 = arith.constant 0 : index
      %c0_13 = arith.constant 0 : index
      %c0_14 = arith.constant 0 : index
      %c0_15 = arith.constant 0 : index
      %16 = vector.load %arg6[%c0_12, %c0_13, %c0_14, %c0_15] : memref<1x1x8x8xbf16, #tpu.memory_space<vmem>>, vector<1x1x8x8xbf16>
      %17 = vector.shape_cast %16 : vector<1x1x8x8xbf16> to vector<8x8xbf16>
      %cst = arith.constant dense<0.000000e+00> : vector<8x8xf32>
      %18 = tpu.matmul %13, %15, %cst {dimension_numbers = #tpu.dot_dimension_numbers<[1], [1], [0], [0], [0, 0, 1, 0], [], []>} : vector<8x8xbf16>, vector<8x8xbf16>, vector<8x8xf32> -> vector<8x8xf32>
      %cst_16 = arith.constant 0.353553385 : f32
      %19 = vector.broadcast %cst_16 : f32 to vector<8x8xf32>
      %20 = arith.mulf %18, %19 : vector<8x8xf32>
      %c8_i32_17 = arith.constant 8 : i32
      %21 = arith.muli %arg2, %c8_i32_17 : i32
      %22 = tpu.iota {dimensions = array<i32: 0>} : vector<8x8xi32>
      %23 = vector.broadcast %21 : i32 to vector<8x8xi32>
      %24 = arith.addi %23, %22 : vector<8x8xi32>
      %c8_i32_18 = arith.constant 8 : i32
      %25 = arith.muli %arg3, %c8_i32_18 : i32
      %26 = tpu.iota {dimensions = array<i32: 1>} : vector<8x8xi32>
      %27 = vector.broadcast %25 : i32 to vector<8x8xi32>
      %28 = arith.addi %27, %26 : vector<8x8xi32>
      %29 = arith.cmpi sle, %28, %24 : vector<8x8xi32>
      %cst_19 = arith.constant -1.000000e+30 : f32
      %30 = vector.broadcast %cst_19 : f32 to vector<8x8xf32>
      %31 = arith.select %29, %20, %30 : vector<8x8xi1>, vector<8x8xf32>
      %c0_20 = arith.constant 0 : index
      %c0_21 = arith.constant 0 : index
      %32 = vector.load %arg8[%c0_20, %c0_21] : memref<8x1xf32, #tpu.memory_space<vmem>>, vector<8x1xf32>
      %cst_22 = arith.constant dense<0xFF800000> : vector<8xf32>
      %33 = vector.multi_reduction <maximumf>, %31, %cst_22 [1] : vector<8x8xf32> to vector<8xf32>
      %34 = vector.shape_cast %33 : vector<8xf32> to vector<8x1xf32>
      %35 = arith.maximumf %32, %34 : vector<8x1xf32>
      %c0_23 = arith.constant 0 : index
      %c0_24 = arith.constant 0 : index
      %36 = vector.load %arg8[%c0_23, %c0_24] : memref<8x1xf32, #tpu.memory_space<vmem>>, vector<8x1xf32>
      %37 = arith.subf %36, %35 : vector<8x1xf32>
      %38 = math.exp %37 : vector<8x1xf32>
      %39 = vector.broadcast %35 : vector<8x1xf32> to vector<8x8xf32>
      %40 = arith.subf %31, %39 : vector<8x8xf32>
      %41 = math.exp %40 : vector<8x8xf32>
      %c0_25 = arith.constant 0 : index
      %c0_26 = arith.constant 0 : index
      %42 = vector.load %arg9[%c0_25, %c0_26] : memref<8x1xf32, #tpu.memory_space<vmem>>, vector<8x1xf32>
      %43 = arith.mulf %38, %42 : vector<8x1xf32>
      %cst_27 = arith.constant dense<0.000000e+00> : vector<8xf32>
      %44 = vector.multi_reduction <add>, %41, %cst_27 [1] : vector<8x8xf32> to vector<8xf32>
      %45 = vector.shape_cast %44 : vector<8xf32> to vector<8x1xf32>
      %46 = arith.addf %43, %45 : vector<8x1xf32>
      %c0_28 = arith.constant 0 : index
      %c0_29 = arith.constant 0 : index
      %47 = vector.load %arg9[%c0_28, %c0_29] : memref<8x1xf32, #tpu.memory_space<vmem>>, vector<8x1xf32>
      tpu.vector_store %arg9[%c0_28, %c0_29], %46 {strides = array<i32>} : memref<8x1xf32, #tpu.memory_space<vmem>>, vector<8x1xf32>,
      %c0_30 = arith.constant 0 : index
      %c0_31 = arith.constant 0 : index
      %48 = vector.load %arg10[%c0_30, %c0_31] : memref<8x8xf32, #tpu.memory_space<vmem>>, vector<8x8xf32>
      %49 = vector.broadcast %38 : vector<8x1xf32> to vector<8x8xf32>
      %50 = arith.mulf %49, %48 : vector<8x8xf32>
      %51 = arith.truncf %41 : vector<8x8xf32> to vector<8x8xbf16>
      %cst_32 = arith.constant dense<0.000000e+00> : vector<8x8xf32>
      %52 = tpu.matmul %51, %17, %cst_32 {dimension_numbers = #tpu.dot_dimension_numbers<[1], [0], [0], [1], [0, 0, 1, 1], [], []>} : vector<8x8xbf16>, vector<8x8xbf16>, vector<8x8xf32> -> vector<8x8xf32>
      %53 = arith.addf %50, %52 : vector<8x8xf32>
      %c0_33 = arith.constant 0 : index
      %c0_34 = arith.constant 0 : index
      %54 = vector.load %arg10[%c0_33, %c0_34] : memref<8x8xf32, #tpu.memory_space<vmem>>, vector<8x8xf32>
      tpu.vector_store %arg10[%c0_33, %c0_34], %53 {strides = array<i32>} : memref<8x8xf32, #tpu.memory_space<vmem>>, vector<8x8xf32>,
      %c0_35 = arith.constant 0 : index
      %c0_36 = arith.constant 0 : index
      %55 = vector.load %arg8[%c0_35, %c0_36] : memref<8x1xf32, #tpu.memory_space<vmem>>, vector<8x1xf32>
      tpu.vector_store %arg8[%c0_35, %c0_36], %35 {strides = array<i32>} : memref<8x1xf32, #tpu.memory_space<vmem>>, vector<8x1xf32>,
    } else {
    }
    %c0_i32_3 = arith.constant 0 : i32
    %9 = arith.cmpi eq, %arg3, %c0_i32_3 : i32
    %10 = arith.extui %9 : i1 to i32
    %c0_i32_4 = arith.constant 0 : i32
    %11 = arith.cmpi ne, %10, %c0_i32_4 : i32
    scf.if %11 {
      %c0 = arith.constant 0 : index
      %c0_5 = arith.constant 0 : index
      %12 = vector.load %arg10[%c0, %c0_5] : memref<8x8xf32, #tpu.memory_space<vmem>>, vector<8x8xf32>
      %c0_6 = arith.constant 0 : index
      %c0_7 = arith.constant 0 : index
      %13 = vector.load %arg9[%c0_6, %c0_7] : memref<8x1xf32, #tpu.memory_space<vmem>>, vector<8x1xf32>
      %14 = tpu.reciprocal %13 : vector<8x1xf32> -> vector<8x1xf32>
      %15 = vector.broadcast %14 : vector<8x1xf32> to vector<8x8xf32>
      %16 = arith.mulf %12, %15 : vector<8x8xf32>
      %17 = arith.truncf %16 : vector<8x8xf32> to vector<8x8xbf16>
      %c0_8 = arith.constant 0 : index
      %c0_9 = arith.constant 0 : index
      %c0_10 = arith.constant 0 : index
      %c0_11 = arith.constant 0 : index
      %18 = vector.load %arg7[%c0_8, %c0_9, %c0_10, %c0_11] : memref<1x1x8x8xbf16, #tpu.memory_space<vmem>>, vector<1x1x8x8xbf16>
      %19 = vector.shape_cast %18 : vector<1x1x8x8xbf16> to vector<8x8xbf16>
      %20 = vector.shape_cast %17 : vector<8x8xbf16> to vector<1x1x8x8xbf16>
      tpu.vector_store %arg7[%c0_8, %c0_9, %c0_10, %c0_11], %20 {strides = array<i32>} : memref<1x1x8x8xbf16, #tpu.memory_space<vmem>>, vector<1x1x8x8xbf16>,
    } else {
    }
    return
  }
  func.func @transform_0(%arg0: i32, %arg1: i32, %arg2: i32, %arg3: i32) -> (i32, i32, i32, i32) {
    %c0_i32 = arith.constant 0 : i32
    %c0_i32_0 = arith.constant 0 : i32
    return %arg0, %arg1, %arg2, %c0_i32 : i32, i32, i32, i32
  }
  func.func @transform_1(%arg0: i32, %arg1: i32, %arg2: i32, %arg3: i32) -> (i32, i32, i32, i32) {
    %c0_i32 = arith.constant 0 : i32
    %c0_i32_0 = arith.constant 0 : i32
    return %arg0, %arg1, %arg3, %c0_i32 : i32, i32, i32, i32
  }
  func.func @transform_2(%arg0: i32, %arg1: i32, %arg2: i32, %arg3: i32) -> (i32, i32, i32, i32) {
    %c0_i32 = arith.constant 0 : i32
    %c0_i32_0 = arith.constant 0 : i32
    return %arg0, %arg1, %arg3, %c0_i32 : i32, i32, i32, i32
  }
  func.func @transform_3(%arg0: i32, %arg1: i32, %arg2: i32, %arg3: i32) -> (i32, i32, i32, i32) {
    %c0_i32 = arith.constant 0 : i32
    %c0_i32_0 = arith.constant 0 : i32
    return %arg0, %arg1, %arg2, %c0_i32 : i32, i32, i32, i32
  }
}

module attributes {stable_mosaic.version = 11 : i64} {
  func.func @_linear_res_ln_kernel(%arg0: i32, %arg1: i32, %arg2: memref<16x32xbf16, #tpu.memory_space<vmem>>, %arg3: memref<32x32xbf16, #tpu.memory_space<vmem>>, %arg4: memref<1x32xf32, #tpu.memory_space<vmem>>, %arg5: memref<16x32xbf16, #tpu.memory_space<vmem>>, %arg6: memref<1x32xf32, #tpu.memory_space<vmem>>, %arg7: memref<1x32xf32, #tpu.memory_space<vmem>>, %arg8: memref<16x32xbf16, #tpu.memory_space<vmem>>, %arg9: memref<16x32xf32, #tpu.memory_space<vmem>>) attributes {dimension_semantics = [#tpu.dimension_semantics<parallel>, #tpu.dimension_semantics<arbitrary>], iteration_bounds = array<i64: 1, 1>, scalar_prefetch = 0 : i64, scratch_operands = 1 : i64, tpu.core_type = #tpu.core_type<tc>, window_params = [{transform_indices = @transform_0, window_bounds = array<i64: 16, 32>}, {transform_indices = @transform_1, window_bounds = array<i64: 32, 32>}, {pipeline_mode = #tpu.pipeline_mode<synchronous>, transform_indices = @transform_2, window_bounds = array<i64: 1, 32>}, {transform_indices = @transform_3, window_bounds = array<i64: 16, 32>}, {pipeline_mode = #tpu.pipeline_mode<synchronous>, transform_indices = @transform_4, window_bounds = array<i64: 1, 32>}, {pipeline_mode = #tpu.pipeline_mode<synchronous>, transform_indices = @transform_5, window_bounds = array<i64: 1, 32>}, {transform_indices = @transform_6, window_bounds = array<i64: 16, 32>}]} {
    %c0_i32 = arith.constant 0 : i32
    %0 = arith.cmpi eq, %arg1, %c0_i32 : i32
    %1 = arith.extui %0 : i1 to i32
    %c0_i32_0 = arith.constant 0 : i32
    %2 = arith.cmpi ne, %1, %c0_i32_0 : i32
    scf.if %2 {
      %cst_10 = arith.constant 0.000000e+00 : f32
      %12 = vector.broadcast %cst_10 : f32 to vector<16x32xf32>
      %c0_11 = arith.constant 0 : index
      %c0_12 = arith.constant 0 : index
      %13 = vector.load %arg9[%c0_11, %c0_12] : memref<16x32xf32, #tpu.memory_space<vmem>>, vector<16x32xf32>
      tpu.vector_store %arg9[%c0_11, %c0_12], %12 {strides = array<i32>} : memref<16x32xf32, #tpu.memory_space<vmem>>, vector<16x32xf32>,
    } else {
    }
    %c0 = arith.constant 0 : index
    %c0_1 = arith.constant 0 : index
    %3 = vector.load %arg9[%c0, %c0_1] : memref<16x32xf32, #tpu.memory_space<vmem>>, vector<16x32xf32>
    %c0_2 = arith.constant 0 : index
    %c0_3 = arith.constant 0 : index
    %4 = vector.load %arg2[%c0_2, %c0_3] : memref<16x32xbf16, #tpu.memory_space<vmem>>, vector<16x32xbf16>
    %c0_4 = arith.constant 0 : index
    %c0_5 = arith.constant 0 : index
    %5 = vector.load %arg3[%c0_4, %c0_5] : memref<32x32xbf16, #tpu.memory_space<vmem>>, vector<32x32xbf16>
    %cst = arith.constant dense<0.000000e+00> : vector<16x32xf32>
    %6 = tpu.matmul %4, %5, %cst {dimension_numbers = #tpu.dot_dimension_numbers<[1], [0], [0], [1], [0, 0, 1, 1], [], []>} : vector<16x32xbf16>, vector<32x32xbf16>, vector<16x32xf32> -> vector<16x32xf32>
    %7 = arith.addf %3, %6 : vector<16x32xf32>
    %c0_6 = arith.constant 0 : index
    %c0_7 = arith.constant 0 : index
    %8 = vector.load %arg9[%c0_6, %c0_7] : memref<16x32xf32, #tpu.memory_space<vmem>>, vector<16x32xf32>
    tpu.vector_store %arg9[%c0_6, %c0_7], %7 {strides = array<i32>} : memref<16x32xf32, #tpu.memory_space<vmem>>, vector<16x32xf32>,
    %c0_i32_8 = arith.constant 0 : i32
    %9 = arith.cmpi eq, %arg1, %c0_i32_8 : i32
    %10 = arith.extui %9 : i1 to i32
    %c0_i32_9 = arith.constant 0 : i32
    %11 = arith.cmpi ne, %10, %c0_i32_9 : i32
    scf.if %11 {
      %c0_10 = arith.constant 0 : index
      %c0_11 = arith.constant 0 : index
      %12 = vector.load %arg9[%c0_10, %c0_11] : memref<16x32xf32, #tpu.memory_space<vmem>>, vector<16x32xf32>
      %c0_12 = arith.constant 0 : index
      %c0_13 = arith.constant 0 : index
      %13 = vector.load %arg4[%c0_12, %c0_13] : memref<1x32xf32, #tpu.memory_space<vmem>>, vector<1x32xf32>
      %14 = vector.broadcast %13 : vector<1x32xf32> to vector<16x32xf32>
      %15 = arith.addf %12, %14 : vector<16x32xf32>
      %c0_14 = arith.constant 0 : index
      %c0_15 = arith.constant 0 : index
      %16 = vector.load %arg5[%c0_14, %c0_15] : memref<16x32xbf16, #tpu.memory_space<vmem>>, vector<16x32xbf16>
      %17 = arith.extf %16 : vector<16x32xbf16> to vector<16x32xf32>
      %18 = arith.addf %15, %17 : vector<16x32xf32>
      %c0_16 = arith.constant 0 : index
      %c0_17 = arith.constant 0 : index
      %19 = vector.load %arg6[%c0_16, %c0_17] : memref<1x32xf32, #tpu.memory_space<vmem>>, vector<1x32xf32>
      %c0_18 = arith.constant 0 : index
      %c0_19 = arith.constant 0 : index
      %20 = vector.load %arg7[%c0_18, %c0_19] : memref<1x32xf32, #tpu.memory_space<vmem>>, vector<1x32xf32>
      %cst_20 = arith.constant dense<0.000000e+00> : vector<16xf32>
      %21 = vector.multi_reduction <add>, %18, %cst_20 [1] : vector<16x32xf32> to vector<16xf32>
      %22 = vector.shape_cast %21 : vector<16xf32> to vector<16x1xf32>
      %cst_21 = arith.constant 3.200000e+01 : f32
      %23 = vector.broadcast %cst_21 : f32 to vector<16x1xf32>
      %24 = arith.divf %22, %23 : vector<16x1xf32>
      %25 = vector.broadcast %24 : vector<16x1xf32> to vector<16x32xf32>
      %26 = arith.subf %18, %25 : vector<16x32xf32>
      %27 = arith.mulf %26, %26 : vector<16x32xf32>
      %cst_22 = arith.constant dense<0.000000e+00> : vector<16xf32>
      %28 = vector.multi_reduction <add>, %27, %cst_22 [1] : vector<16x32xf32> to vector<16xf32>
      %29 = vector.shape_cast %28 : vector<16xf32> to vector<16x1xf32>
      %cst_23 = arith.constant 3.200000e+01 : f32
      %30 = vector.broadcast %cst_23 : f32 to vector<16x1xf32>
      %31 = arith.divf %29, %30 : vector<16x1xf32>
      %cst_24 = arith.constant 9.99999974E-6 : f32
      %32 = vector.broadcast %cst_24 : f32 to vector<16x1xf32>
      %33 = arith.addf %31, %32 : vector<16x1xf32>
      %34 = math.rsqrt %33 : vector<16x1xf32>
      %35 = vector.broadcast %34 : vector<16x1xf32> to vector<16x32xf32>
      %36 = arith.mulf %26, %35 : vector<16x32xf32>
      %37 = vector.broadcast %19 : vector<1x32xf32> to vector<16x32xf32>
      %38 = arith.mulf %36, %37 : vector<16x32xf32>
      %39 = vector.broadcast %20 : vector<1x32xf32> to vector<16x32xf32>
      %40 = arith.addf %38, %39 : vector<16x32xf32>
      %41 = arith.truncf %40 : vector<16x32xf32> to vector<16x32xbf16>
      %c0_25 = arith.constant 0 : index
      %c0_26 = arith.constant 0 : index
      %42 = vector.load %arg8[%c0_25, %c0_26] : memref<16x32xbf16, #tpu.memory_space<vmem>>, vector<16x32xbf16>
      tpu.vector_store %arg8[%c0_25, %c0_26], %41 {strides = array<i32>} : memref<16x32xbf16, #tpu.memory_space<vmem>>, vector<16x32xbf16>,
    } else {
    }
    return
  }
  func.func @transform_0(%arg0: i32, %arg1: i32) -> (i32, i32) {
    %c0_i32 = arith.constant 0 : i32
    return %arg0, %arg1 : i32, i32
  }
  func.func @transform_1(%arg0: i32, %arg1: i32) -> (i32, i32) {
    %c0_i32 = arith.constant 0 : i32
    %c0_i32_0 = arith.constant 0 : i32
    return %arg1, %c0_i32 : i32, i32
  }
  func.func @transform_2(%arg0: i32, %arg1: i32) -> (i32, i32) {
    %c0_i32 = arith.constant 0 : i32
    %c0_i32_0 = arith.constant 0 : i32
    %c0_i32_1 = arith.constant 0 : i32
    return %c0_i32, %c0_i32_0 : i32, i32
  }
  func.func @transform_3(%arg0: i32, %arg1: i32) -> (i32, i32) {
    %c0_i32 = arith.constant 0 : i32
    %c0_i32_0 = arith.constant 0 : i32
    return %arg0, %c0_i32 : i32, i32
  }
  func.func @transform_4(%arg0: i32, %arg1: i32) -> (i32, i32) {
    %c0_i32 = arith.constant 0 : i32
    %c0_i32_0 = arith.constant 0 : i32
    %c0_i32_1 = arith.constant 0 : i32
    return %c0_i32, %c0_i32_0 : i32, i32
  }
  func.func @transform_5(%arg0: i32, %arg1: i32) -> (i32, i32) {
    %c0_i32 = arith.constant 0 : i32
    %c0_i32_0 = arith.constant 0 : i32
    %c0_i32_1 = arith.constant 0 : i32
    return %c0_i32, %c0_i32_0 : i32, i32
  }
  func.func @transform_6(%arg0: i32, %arg1: i32) -> (i32, i32) {
    %c0_i32 = arith.constant 0 : i32
    %c0_i32_0 = arith.constant 0 : i32
    return %arg0, %c0_i32 : i32, i32
  }
}

module attributes {stable_mosaic.version = 11 : i64} {
  func.func @_linear_kernel(%arg0: i32, %arg1: i32, %arg2: i32, %arg3: memref<16x32xbf16, #tpu.memory_space<vmem>>, %arg4: memref<32x128xbf16, #tpu.memory_space<vmem>>, %arg5: memref<1x128xf32, #tpu.memory_space<vmem>>, %arg6: memref<16x128xbf16, #tpu.memory_space<vmem>>, %arg7: memref<16x128xf32, #tpu.memory_space<vmem>>) attributes {dimension_semantics = [#tpu.dimension_semantics<parallel>, #tpu.dimension_semantics<parallel>, #tpu.dimension_semantics<arbitrary>], iteration_bounds = array<i64: 1, 1, 1>, scalar_prefetch = 0 : i64, scratch_operands = 1 : i64, tpu.core_type = #tpu.core_type<tc>, window_params = [{transform_indices = @transform_0, window_bounds = array<i64: 16, 32>}, {transform_indices = @transform_1, window_bounds = array<i64: 32, 128>}, {transform_indices = @transform_2, window_bounds = array<i64: 1, 128>}, {transform_indices = @transform_3, window_bounds = array<i64: 16, 128>}]} {
    %c0_i32 = arith.constant 0 : i32
    %0 = arith.cmpi eq, %arg2, %c0_i32 : i32
    %1 = arith.extui %0 : i1 to i32
    %c0_i32_0 = arith.constant 0 : i32
    %2 = arith.cmpi ne, %1, %c0_i32_0 : i32
    scf.if %2 {
      %cst_10 = arith.constant 0.000000e+00 : f32
      %12 = vector.broadcast %cst_10 : f32 to vector<16x128xf32>
      %c0_11 = arith.constant 0 : index
      %c0_12 = arith.constant 0 : index
      %13 = vector.load %arg7[%c0_11, %c0_12] : memref<16x128xf32, #tpu.memory_space<vmem>>, vector<16x128xf32>
      tpu.vector_store %arg7[%c0_11, %c0_12], %12 {strides = array<i32>} : memref<16x128xf32, #tpu.memory_space<vmem>>, vector<16x128xf32>,
    } else {
    }
    %c0 = arith.constant 0 : index
    %c0_1 = arith.constant 0 : index
    %3 = vector.load %arg7[%c0, %c0_1] : memref<16x128xf32, #tpu.memory_space<vmem>>, vector<16x128xf32>
    %c0_2 = arith.constant 0 : index
    %c0_3 = arith.constant 0 : index
    %4 = vector.load %arg3[%c0_2, %c0_3] : memref<16x32xbf16, #tpu.memory_space<vmem>>, vector<16x32xbf16>
    %c0_4 = arith.constant 0 : index
    %c0_5 = arith.constant 0 : index
    %5 = vector.load %arg4[%c0_4, %c0_5] : memref<32x128xbf16, #tpu.memory_space<vmem>>, vector<32x128xbf16>
    %cst = arith.constant dense<0.000000e+00> : vector<16x128xf32>
    %6 = tpu.matmul %4, %5, %cst {dimension_numbers = #tpu.dot_dimension_numbers<[1], [0], [0], [1], [0, 0, 1, 1], [], []>} : vector<16x32xbf16>, vector<32x128xbf16>, vector<16x128xf32> -> vector<16x128xf32>
    %7 = arith.addf %3, %6 : vector<16x128xf32>
    %c0_6 = arith.constant 0 : index
    %c0_7 = arith.constant 0 : index
    %8 = vector.load %arg7[%c0_6, %c0_7] : memref<16x128xf32, #tpu.memory_space<vmem>>, vector<16x128xf32>
    tpu.vector_store %arg7[%c0_6, %c0_7], %7 {strides = array<i32>} : memref<16x128xf32, #tpu.memory_space<vmem>>, vector<16x128xf32>,
    %c0_i32_8 = arith.constant 0 : i32
    %9 = arith.cmpi eq, %arg2, %c0_i32_8 : i32
    %10 = arith.extui %9 : i1 to i32
    %c0_i32_9 = arith.constant 0 : i32
    %11 = arith.cmpi ne, %10, %c0_i32_9 : i32
    scf.if %11 {
      %c0_10 = arith.constant 0 : index
      %c0_11 = arith.constant 0 : index
      %12 = vector.load %arg7[%c0_10, %c0_11] : memref<16x128xf32, #tpu.memory_space<vmem>>, vector<16x128xf32>
      %c0_12 = arith.constant 0 : index
      %c0_13 = arith.constant 0 : index
      %13 = vector.load %arg5[%c0_12, %c0_13] : memref<1x128xf32, #tpu.memory_space<vmem>>, vector<1x128xf32>
      %14 = vector.broadcast %13 : vector<1x128xf32> to vector<16x128xf32>
      %15 = arith.addf %12, %14 : vector<16x128xf32>
      %cst_14 = arith.constant 0.000000e+00 : f32
      %16 = vector.broadcast %cst_14 : f32 to vector<16x128xf32>
      %17 = arith.maximumf %15, %16 : vector<16x128xf32>
      %18 = arith.truncf %17 : vector<16x128xf32> to vector<16x128xbf16>
      %c0_15 = arith.constant 0 : index
      %c0_16 = arith.constant 0 : index
      %19 = vector.load %arg6[%c0_15, %c0_16] : memref<16x128xbf16, #tpu.memory_space<vmem>>, vector<16x128xbf16>
      tpu.vector_store %arg6[%c0_15, %c0_16], %18 {strides = array<i32>} : memref<16x128xbf16, #tpu.memory_space<vmem>>, vector<16x128xbf16>,
    } else {
    }
    return
  }
  func.func @transform_0(%arg0: i32, %arg1: i32, %arg2: i32) -> (i32, i32) {
    %c0_i32 = arith.constant 0 : i32
    return %arg0, %arg2 : i32, i32
  }
  func.func @transform_1(%arg0: i32, %arg1: i32, %arg2: i32) -> (i32, i32) {
    %c0_i32 = arith.constant 0 : i32
    return %arg2, %arg1 : i32, i32
  }
  func.func @transform_2(%arg0: i32, %arg1: i32, %arg2: i32) -> (i32, i32) {
    %c0_i32 = arith.constant 0 : i32
    %c0_i32_0 = arith.constant 0 : i32
    return %c0_i32, %arg1 : i32, i32
  }
  func.func @transform_3(%arg0: i32, %arg1: i32, %arg2: i32) -> (i32, i32) {
    %c0_i32 = arith.constant 0 : i32
    return %arg0, %arg1 : i32, i32
  }
}

module attributes {stable_mosaic.version = 11 : i64} {
  func.func @_linear_res_ln_kernel(%arg0: i32, %arg1: i32, %arg2: memref<16x128xbf16, #tpu.memory_space<vmem>>, %arg3: memref<128x32xbf16, #tpu.memory_space<vmem>>, %arg4: memref<1x32xf32, #tpu.memory_space<vmem>>, %arg5: memref<16x32xbf16, #tpu.memory_space<vmem>>, %arg6: memref<1x32xf32, #tpu.memory_space<vmem>>, %arg7: memref<1x32xf32, #tpu.memory_space<vmem>>, %arg8: memref<16x32xbf16, #tpu.memory_space<vmem>>, %arg9: memref<16x32xf32, #tpu.memory_space<vmem>>) attributes {dimension_semantics = [#tpu.dimension_semantics<parallel>, #tpu.dimension_semantics<arbitrary>], iteration_bounds = array<i64: 1, 1>, scalar_prefetch = 0 : i64, scratch_operands = 1 : i64, tpu.core_type = #tpu.core_type<tc>, window_params = [{transform_indices = @transform_0, window_bounds = array<i64: 16, 128>}, {transform_indices = @transform_1, window_bounds = array<i64: 128, 32>}, {pipeline_mode = #tpu.pipeline_mode<synchronous>, transform_indices = @transform_2, window_bounds = array<i64: 1, 32>}, {transform_indices = @transform_3, window_bounds = array<i64: 16, 32>}, {pipeline_mode = #tpu.pipeline_mode<synchronous>, transform_indices = @transform_4, window_bounds = array<i64: 1, 32>}, {pipeline_mode = #tpu.pipeline_mode<synchronous>, transform_indices = @transform_5, window_bounds = array<i64: 1, 32>}, {transform_indices = @transform_6, window_bounds = array<i64: 16, 32>}]} {
    %c0_i32 = arith.constant 0 : i32
    %0 = arith.cmpi eq, %arg1, %c0_i32 : i32
    %1 = arith.extui %0 : i1 to i32
    %c0_i32_0 = arith.constant 0 : i32
    %2 = arith.cmpi ne, %1, %c0_i32_0 : i32
    scf.if %2 {
      %cst_10 = arith.constant 0.000000e+00 : f32
      %12 = vector.broadcast %cst_10 : f32 to vector<16x32xf32>
      %c0_11 = arith.constant 0 : index
      %c0_12 = arith.constant 0 : index
      %13 = vector.load %arg9[%c0_11, %c0_12] : memref<16x32xf32, #tpu.memory_space<vmem>>, vector<16x32xf32>
      tpu.vector_store %arg9[%c0_11, %c0_12], %12 {strides = array<i32>} : memref<16x32xf32, #tpu.memory_space<vmem>>, vector<16x32xf32>,
    } else {
    }
    %c0 = arith.constant 0 : index
    %c0_1 = arith.constant 0 : index
    %3 = vector.load %arg9[%c0, %c0_1] : memref<16x32xf32, #tpu.memory_space<vmem>>, vector<16x32xf32>
    %c0_2 = arith.constant 0 : index
    %c0_3 = arith.constant 0 : index
    %4 = vector.load %arg2[%c0_2, %c0_3] : memref<16x128xbf16, #tpu.memory_space<vmem>>, vector<16x128xbf16>
    %c0_4 = arith.constant 0 : index
    %c0_5 = arith.constant 0 : index
    %5 = vector.load %arg3[%c0_4, %c0_5] : memref<128x32xbf16, #tpu.memory_space<vmem>>, vector<128x32xbf16>
    %cst = arith.constant dense<0.000000e+00> : vector<16x32xf32>
    %6 = tpu.matmul %4, %5, %cst {dimension_numbers = #tpu.dot_dimension_numbers<[1], [0], [0], [1], [0, 0, 1, 1], [], []>} : vector<16x128xbf16>, vector<128x32xbf16>, vector<16x32xf32> -> vector<16x32xf32>
    %7 = arith.addf %3, %6 : vector<16x32xf32>
    %c0_6 = arith.constant 0 : index
    %c0_7 = arith.constant 0 : index
    %8 = vector.load %arg9[%c0_6, %c0_7] : memref<16x32xf32, #tpu.memory_space<vmem>>, vector<16x32xf32>
    tpu.vector_store %arg9[%c0_6, %c0_7], %7 {strides = array<i32>} : memref<16x32xf32, #tpu.memory_space<vmem>>, vector<16x32xf32>,
    %c0_i32_8 = arith.constant 0 : i32
    %9 = arith.cmpi eq, %arg1, %c0_i32_8 : i32
    %10 = arith.extui %9 : i1 to i32
    %c0_i32_9 = arith.constant 0 : i32
    %11 = arith.cmpi ne, %10, %c0_i32_9 : i32
    scf.if %11 {
      %c0_10 = arith.constant 0 : index
      %c0_11 = arith.constant 0 : index
      %12 = vector.load %arg9[%c0_10, %c0_11] : memref<16x32xf32, #tpu.memory_space<vmem>>, vector<16x32xf32>
      %c0_12 = arith.constant 0 : index
      %c0_13 = arith.constant 0 : index
      %13 = vector.load %arg4[%c0_12, %c0_13] : memref<1x32xf32, #tpu.memory_space<vmem>>, vector<1x32xf32>
      %14 = vector.broadcast %13 : vector<1x32xf32> to vector<16x32xf32>
      %15 = arith.addf %12, %14 : vector<16x32xf32>
      %c0_14 = arith.constant 0 : index
      %c0_15 = arith.constant 0 : index
      %16 = vector.load %arg5[%c0_14, %c0_15] : memref<16x32xbf16, #tpu.memory_space<vmem>>, vector<16x32xbf16>
      %17 = arith.extf %16 : vector<16x32xbf16> to vector<16x32xf32>
      %18 = arith.addf %15, %17 : vector<16x32xf32>
      %c0_16 = arith.constant 0 : index
      %c0_17 = arith.constant 0 : index
      %19 = vector.load %arg6[%c0_16, %c0_17] : memref<1x32xf32, #tpu.memory_space<vmem>>, vector<1x32xf32>
      %c0_18 = arith.constant 0 : index
      %c0_19 = arith.constant 0 : index
      %20 = vector.load %arg7[%c0_18, %c0_19] : memref<1x32xf32, #tpu.memory_space<vmem>>, vector<1x32xf32>
      %cst_20 = arith.constant dense<0.000000e+00> : vector<16xf32>
      %21 = vector.multi_reduction <add>, %18, %cst_20 [1] : vector<16x32xf32> to vector<16xf32>
      %22 = vector.shape_cast %21 : vector<16xf32> to vector<16x1xf32>
      %cst_21 = arith.constant 3.200000e+01 : f32
      %23 = vector.broadcast %cst_21 : f32 to vector<16x1xf32>
      %24 = arith.divf %22, %23 : vector<16x1xf32>
      %25 = vector.broadcast %24 : vector<16x1xf32> to vector<16x32xf32>
      %26 = arith.subf %18, %25 : vector<16x32xf32>
      %27 = arith.mulf %26, %26 : vector<16x32xf32>
      %cst_22 = arith.constant dense<0.000000e+00> : vector<16xf32>
      %28 = vector.multi_reduction <add>, %27, %cst_22 [1] : vector<16x32xf32> to vector<16xf32>
      %29 = vector.shape_cast %28 : vector<16xf32> to vector<16x1xf32>
      %cst_23 = arith.constant 3.200000e+01 : f32
      %30 = vector.broadcast %cst_23 : f32 to vector<16x1xf32>
      %31 = arith.divf %29, %30 : vector<16x1xf32>
      %cst_24 = arith.constant 9.99999974E-6 : f32
      %32 = vector.broadcast %cst_24 : f32 to vector<16x1xf32>
      %33 = arith.addf %31, %32 : vector<16x1xf32>
      %34 = math.rsqrt %33 : vector<16x1xf32>
      %35 = vector.broadcast %34 : vector<16x1xf32> to vector<16x32xf32>
      %36 = arith.mulf %26, %35 : vector<16x32xf32>
      %37 = vector.broadcast %19 : vector<1x32xf32> to vector<16x32xf32>
      %38 = arith.mulf %36, %37 : vector<16x32xf32>
      %39 = vector.broadcast %20 : vector<1x32xf32> to vector<16x32xf32>
      %40 = arith.addf %38, %39 : vector<16x32xf32>
      %41 = arith.truncf %40 : vector<16x32xf32> to vector<16x32xbf16>
      %c0_25 = arith.constant 0 : index
      %c0_26 = arith.constant 0 : index
      %42 = vector.load %arg8[%c0_25, %c0_26] : memref<16x32xbf16, #tpu.memory_space<vmem>>, vector<16x32xbf16>
      tpu.vector_store %arg8[%c0_25, %c0_26], %41 {strides = array<i32>} : memref<16x32xbf16, #tpu.memory_space<vmem>>, vector<16x32xbf16>,
    } else {
    }
    return
  }
  func.func @transform_0(%arg0: i32, %arg1: i32) -> (i32, i32) {
    %c0_i32 = arith.constant 0 : i32
    return %arg0, %arg1 : i32, i32
  }
  func.func @transform_1(%arg0: i32, %arg1: i32) -> (i32, i32) {
    %c0_i32 = arith.constant 0 : i32
    %c0_i32_0 = arith.constant 0 : i32
    return %arg1, %c0_i32 : i32, i32
  }
  func.func @transform_2(%arg0: i32, %arg1: i32) -> (i32, i32) {
    %c0_i32 = arith.constant 0 : i32
    %c0_i32_0 = arith.constant 0 : i32
    %c0_i32_1 = arith.constant 0 : i32
    return %c0_i32, %c0_i32_0 : i32, i32
  }
  func.func @transform_3(%arg0: i32, %arg1: i32) -> (i32, i32) {
    %c0_i32 = arith.constant 0 : i32
    %c0_i32_0 = arith.constant 0 : i32
    return %arg0, %c0_i32 : i32, i32
  }
  func.func @transform_4(%arg0: i32, %arg1: i32) -> (i32, i32) {
    %c0_i32 = arith.constant 0 : i32
    %c0_i32_0 = arith.constant 0 : i32
    %c0_i32_1 = arith.constant 0 : i32
    return %c0_i32, %c0_i32_0 : i32, i32
  }
  func.func @transform_5(%arg0: i32, %arg1: i32) -> (i32, i32) {
    %c0_i32 = arith.constant 0 : i32
    %c0_i32_0 = arith.constant 0 : i32
    %c0_i32_1 = arith.constant 0 : i32
    return %c0_i32, %c0_i32_0 : i32, i32
  }
  func.func @transform_6(%arg0: i32, %arg1: i32) -> (i32, i32) {
    %c0_i32 = arith.constant 0 : i32
    %c0_i32_0 = arith.constant 0 : i32
    return %arg0, %c0_i32 : i32, i32
  }
}

module attributes {stable_mosaic.version = 11 : i64} {
  func.func @_ln_kernel(%arg0: i32, %arg1: memref<16x32xbf16, #tpu.memory_space<vmem>>, %arg2: memref<1x32xf32, #tpu.memory_space<vmem>>, %arg3: memref<1x32xf32, #tpu.memory_space<vmem>>, %arg4: memref<16x32xbf16, #tpu.memory_space<vmem>>) attributes {dimension_semantics = [#tpu.dimension_semantics<parallel>], iteration_bounds = array<i64: 1>, scalar_prefetch = 0 : i64, scratch_operands = 0 : i64, tpu.core_type = #tpu.core_type<tc>, window_params = [{transform_indices = @transform_0, window_bounds = array<i64: 16, 32>}, {pipeline_mode = #tpu.pipeline_mode<synchronous>, transform_indices = @transform_1, window_bounds = array<i64: 1, 32>}, {pipeline_mode = #tpu.pipeline_mode<synchronous>, transform_indices = @transform_2, window_bounds = array<i64: 1, 32>}, {transform_indices = @transform_3, window_bounds = array<i64: 16, 32>}]} {
    %c0 = arith.constant 0 : index
    %c0_0 = arith.constant 0 : index
    %0 = vector.load %arg1[%c0, %c0_0] : memref<16x32xbf16, #tpu.memory_space<vmem>>, vector<16x32xbf16>
    %1 = arith.extf %0 : vector<16x32xbf16> to vector<16x32xf32>
    %c0_1 = arith.constant 0 : index
    %c0_2 = arith.constant 0 : index
    %2 = vector.load %arg2[%c0_1, %c0_2] : memref<1x32xf32, #tpu.memory_space<vmem>>, vector<1x32xf32>
    %c0_3 = arith.constant 0 : index
    %c0_4 = arith.constant 0 : index
    %3 = vector.load %arg3[%c0_3, %c0_4] : memref<1x32xf32, #tpu.memory_space<vmem>>, vector<1x32xf32>
    %cst = arith.constant dense<0.000000e+00> : vector<16xf32>
    %4 = vector.multi_reduction <add>, %1, %cst [1] : vector<16x32xf32> to vector<16xf32>
    %5 = vector.shape_cast %4 : vector<16xf32> to vector<16x1xf32>
    %cst_5 = arith.constant 3.200000e+01 : f32
    %6 = vector.broadcast %cst_5 : f32 to vector<16x1xf32>
    %7 = arith.divf %5, %6 : vector<16x1xf32>
    %8 = vector.broadcast %7 : vector<16x1xf32> to vector<16x32xf32>
    %9 = arith.subf %1, %8 : vector<16x32xf32>
    %10 = arith.mulf %9, %9 : vector<16x32xf32>
    %cst_6 = arith.constant dense<0.000000e+00> : vector<16xf32>
    %11 = vector.multi_reduction <add>, %10, %cst_6 [1] : vector<16x32xf32> to vector<16xf32>
    %12 = vector.shape_cast %11 : vector<16xf32> to vector<16x1xf32>
    %cst_7 = arith.constant 3.200000e+01 : f32
    %13 = vector.broadcast %cst_7 : f32 to vector<16x1xf32>
    %14 = arith.divf %12, %13 : vector<16x1xf32>
    %cst_8 = arith.constant 9.99999974E-6 : f32
    %15 = vector.broadcast %cst_8 : f32 to vector<16x1xf32>
    %16 = arith.addf %14, %15 : vector<16x1xf32>
    %17 = math.rsqrt %16 : vector<16x1xf32>
    %18 = vector.broadcast %17 : vector<16x1xf32> to vector<16x32xf32>
    %19 = arith.mulf %9, %18 : vector<16x32xf32>
    %20 = vector.broadcast %2 : vector<1x32xf32> to vector<16x32xf32>
    %21 = arith.mulf %19, %20 : vector<16x32xf32>
    %22 = vector.broadcast %3 : vector<1x32xf32> to vector<16x32xf32>
    %23 = arith.addf %21, %22 : vector<16x32xf32>
    %24 = arith.truncf %23 : vector<16x32xf32> to vector<16x32xbf16>
    %c0_9 = arith.constant 0 : index
    %c0_10 = arith.constant 0 : index
    %25 = vector.load %arg4[%c0_9, %c0_10] : memref<16x32xbf16, #tpu.memory_space<vmem>>, vector<16x32xbf16>
    tpu.vector_store %arg4[%c0_9, %c0_10], %24 {strides = array<i32>} : memref<16x32xbf16, #tpu.memory_space<vmem>>, vector<16x32xbf16>,
    return
  }
  func.func @transform_0(%arg0: i32) -> (i32, i32) {
    %c0_i32 = arith.constant 0 : i32
    %c0_i32_0 = arith.constant 0 : i32
    return %arg0, %c0_i32 : i32, i32
  }
  func.func @transform_1(%arg0: i32) -> (i32, i32) {
    %c0_i32 = arith.constant 0 : i32
    %c0_i32_0 = arith.constant 0 : i32
    %c0_i32_1 = arith.constant 0 : i32
    return %c0_i32, %c0_i32_0 : i32, i32
  }
  func.func @transform_2(%arg0: i32) -> (i32, i32) {
    %c0_i32 = arith.constant 0 : i32
    %c0_i32_0 = arith.constant 0 : i32
    %c0_i32_1 = arith.constant 0 : i32
    return %c0_i32, %c0_i32_0 : i32, i32
  }
  func.func @transform_3(%arg0: i32) -> (i32, i32) {
    %c0_i32 = arith.constant 0 : i32
    %c0_i32_0 = arith.constant 0 : i32
    return %arg0, %c0_i32 : i32, i32
  }
}

module attributes {stable_mosaic.version = 11 : i64} {
  func.func @_linear_kernel(%arg0: i32, %arg1: i32, %arg2: i32, %arg3: memref<16x32xbf16, #tpu.memory_space<vmem>>, %arg4: memref<32x64xbf16, #tpu.memory_space<vmem>>, %arg5: memref<1x64xf32, #tpu.memory_space<vmem>>, %arg6: memref<16x64xbf16, #tpu.memory_space<vmem>>, %arg7: memref<16x64xf32, #tpu.memory_space<vmem>>) attributes {dimension_semantics = [#tpu.dimension_semantics<parallel>, #tpu.dimension_semantics<parallel>, #tpu.dimension_semantics<arbitrary>], iteration_bounds = array<i64: 1, 1, 1>, scalar_prefetch = 0 : i64, scratch_operands = 1 : i64, tpu.core_type = #tpu.core_type<tc>, window_params = [{transform_indices = @transform_0, window_bounds = array<i64: 16, 32>}, {transform_indices = @transform_1, window_bounds = array<i64: 32, 64>}, {transform_indices = @transform_2, window_bounds = array<i64: 1, 64>}, {transform_indices = @transform_3, window_bounds = array<i64: 16, 64>}]} {
    %c0_i32 = arith.constant 0 : i32
    %0 = arith.cmpi eq, %arg2, %c0_i32 : i32
    %1 = arith.extui %0 : i1 to i32
    %c0_i32_0 = arith.constant 0 : i32
    %2 = arith.cmpi ne, %1, %c0_i32_0 : i32
    scf.if %2 {
      %cst_10 = arith.constant 0.000000e+00 : f32
      %12 = vector.broadcast %cst_10 : f32 to vector<16x64xf32>
      %c0_11 = arith.constant 0 : index
      %c0_12 = arith.constant 0 : index
      %13 = vector.load %arg7[%c0_11, %c0_12] : memref<16x64xf32, #tpu.memory_space<vmem>>, vector<16x64xf32>
      tpu.vector_store %arg7[%c0_11, %c0_12], %12 {strides = array<i32>} : memref<16x64xf32, #tpu.memory_space<vmem>>, vector<16x64xf32>,
    } else {
    }
    %c0 = arith.constant 0 : index
    %c0_1 = arith.constant 0 : index
    %3 = vector.load %arg7[%c0, %c0_1] : memref<16x64xf32, #tpu.memory_space<vmem>>, vector<16x64xf32>
    %c0_2 = arith.constant 0 : index
    %c0_3 = arith.constant 0 : index
    %4 = vector.load %arg3[%c0_2, %c0_3] : memref<16x32xbf16, #tpu.memory_space<vmem>>, vector<16x32xbf16>
    %c0_4 = arith.constant 0 : index
    %c0_5 = arith.constant 0 : index
    %5 = vector.load %arg4[%c0_4, %c0_5] : memref<32x64xbf16, #tpu.memory_space<vmem>>, vector<32x64xbf16>
    %cst = arith.constant dense<0.000000e+00> : vector<16x64xf32>
    %6 = tpu.matmul %4, %5, %cst {dimension_numbers = #tpu.dot_dimension_numbers<[1], [0], [0], [1], [0, 0, 1, 1], [], []>} : vector<16x32xbf16>, vector<32x64xbf16>, vector<16x64xf32> -> vector<16x64xf32>
    %7 = arith.addf %3, %6 : vector<16x64xf32>
    %c0_6 = arith.constant 0 : index
    %c0_7 = arith.constant 0 : index
    %8 = vector.load %arg7[%c0_6, %c0_7] : memref<16x64xf32, #tpu.memory_space<vmem>>, vector<16x64xf32>
    tpu.vector_store %arg7[%c0_6, %c0_7], %7 {strides = array<i32>} : memref<16x64xf32, #tpu.memory_space<vmem>>, vector<16x64xf32>,
    %c0_i32_8 = arith.constant 0 : i32
    %9 = arith.cmpi eq, %arg2, %c0_i32_8 : i32
    %10 = arith.extui %9 : i1 to i32
    %c0_i32_9 = arith.constant 0 : i32
    %11 = arith.cmpi ne, %10, %c0_i32_9 : i32
    scf.if %11 {
      %c0_10 = arith.constant 0 : index
      %c0_11 = arith.constant 0 : index
      %12 = vector.load %arg7[%c0_10, %c0_11] : memref<16x64xf32, #tpu.memory_space<vmem>>, vector<16x64xf32>
      %c0_12 = arith.constant 0 : index
      %c0_13 = arith.constant 0 : index
      %13 = vector.load %arg5[%c0_12, %c0_13] : memref<1x64xf32, #tpu.memory_space<vmem>>, vector<1x64xf32>
      %14 = vector.broadcast %13 : vector<1x64xf32> to vector<16x64xf32>
      %15 = arith.addf %12, %14 : vector<16x64xf32>
      %16 = arith.truncf %15 : vector<16x64xf32> to vector<16x64xbf16>
      %c0_14 = arith.constant 0 : index
      %c0_15 = arith.constant 0 : index
      %17 = vector.load %arg6[%c0_14, %c0_15] : memref<16x64xbf16, #tpu.memory_space<vmem>>, vector<16x64xbf16>
      tpu.vector_store %arg6[%c0_14, %c0_15], %16 {strides = array<i32>} : memref<16x64xbf16, #tpu.memory_space<vmem>>, vector<16x64xbf16>,
    } else {
    }
    return
  }
  func.func @transform_0(%arg0: i32, %arg1: i32, %arg2: i32) -> (i32, i32) {
    %c0_i32 = arith.constant 0 : i32
    return %arg0, %arg2 : i32, i32
  }
  func.func @transform_1(%arg0: i32, %arg1: i32, %arg2: i32) -> (i32, i32) {
    %c0_i32 = arith.constant 0 : i32
    return %arg2, %arg1 : i32, i32
  }
  func.func @transform_2(%arg0: i32, %arg1: i32, %arg2: i32) -> (i32, i32) {
    %c0_i32 = arith.constant 0 : i32
    %c0_i32_0 = arith.constant 0 : i32
    return %c0_i32, %arg1 : i32, i32
  }
  func.func @transform_3(%arg0: i32, %arg1: i32, %arg2: i32) -> (i32, i32) {
    %c0_i32 = arith.constant 0 : i32
    return %arg0, %arg1 : i32, i32
  }
}

</mosaic_0001>

<llo_original>
// kernel: forward.15
$region0: #{forward.15}
  #allocation0 [shape = 'u32[]', space=smem, size = 0x4, offset = 0x4, fixed_abs, tag = 'smem constant byte address 0x4 - core index']
  #allocation1 [shape = 'u32[144,128]{1,0:T(1,128)}', space=vmem, size = 0x12000, scoped, tag = 'internal scratch']
  #allocation2 [shape = 'f32[16,128]{1,0:T(8,128)}', space=vmem, size = 0x2000, scoped, tag = 'scratch operand']
  %s0 = inlined_call_operand.vmem [shape: bf16[16,32], index: 0, kind: input, shape index: {}]
  %s1 = inlined_call_operand.vmem [shape: bf16[32,128], index: 1, kind: input, shape index: {}]
  %s2 = inlined_call_operand.vmem [shape: f32[1,128], index: 2, kind: input, shape index: {}]
  %s3 = inlined_call_operand.vmem [shape: bf16[16,128], index: 3, kind: output, shape index: {}]
  %s4 = sld [smem:[#allocation0]]
  $region30: #{forward.15} parent=0
    _
  %s6 = ssub.s32 1, %s4
  %s7 = scalar_select 0, %s6, %s4
  // Predicated region
  $region2: #{forward.15} parent=0 // pred_check
    _
  $region3: #{forward.15} parent=0 // pred_check_branch
    %9 = sbr.rel (0) target = $region5
  $region4: #{forward.15} parent=0 // pred_region
    _
  $region5: #{forward.15} parent=0 // pred_fallthru
    _
  // Predicated region
  $region6: #{forward.15} parent=0 // pred_check
    _
  $region7: #{forward.15} parent=0 // pred_check_branch
    %11 = sbr.rel (0) target = $region9
  $region8: #{forward.15} parent=0 // pred_region
    _
  $region9: #{forward.15} parent=0 // pred_fallthru
    _
  // Predicated region
  $region10: #{forward.15} parent=0 // pred_check
    _
  $region11: #{forward.15} parent=0 // pred_check_branch
    %13 = sbr.rel (0) target = $region13
  $region12: #{forward.15} parent=0 // pred_region
    _
  $region13: #{forward.15} parent=0 // pred_fallthru
    _
  %p15 = scmp.eq.s32.totalorder 0, 0
  // Predicated region
  $region14: #{forward.15} parent=0 // pred_check
    %p16 = pneg %p15
  $region15: #{forward.15} parent=0 // pred_check_branch
    %18 = sbr.rel (%p16) target = $region17
  $region16: #{forward.15} parent=0 // pred_region
    %19 = vst [vmem:[#allocation2] sm:$0xff] 0.0
    %20 = vst [vmem:[#allocation2 + $0x8] sm:$0xff] 0.0
  $region17: #{forward.15} parent=0 // pred_fallthru
    _
  %v21 = vld [vmem:[#allocation2] sm:$0xff]
  %v22 = vld [vmem:[#allocation2 + $0x8] sm:$0xff]
  %v23 = vld [vmem:[%s0] sm:$0xf]
  %v24 = vld [vmem:[%s0 + $0x4] sm:$0xf]
  %v25 = vld [vmem:[%s1] sm:$0xf]
  %v26 = vld [vmem:[%s1 + $0x4] sm:$0xf]
  %v27 = vld [vmem:[%s1 + $0x8] sm:$0xf]
  %v28 = vld [vmem:[%s1 + $0xc] sm:$0xf]
  %v31 = vunpack.c.l.b16 %v23
  %v32 = vunpack.c.l.b16 %v24
  %v33 = vpack.c.b16 %v32, %v31
  %v38 = vunpack.c.l.b16 %v25
  %v39 = vunpack.c.l.b16 %v26
  %v40 = vunpack.c.l.b16 %v27
  %v41 = vunpack.c.l.b16 %v28
  %v42 = vpack.c.b16 %v39, %v38
  %v43 = vpack.c.b16 %v41, %v40
  %vm46 = vcmask 261120
  %v48 = vsel %vm46, %v33, 0
  %50 = vmatprep.subr.bf16.mxu0 0
  %51 = vmatpush1.bf16.msra.mxu0 %v42
  %52 = vmatprep.subr.bf16.mxu0 0
  %53 = vmatpush1.bf16.msra.mxu0 %v43
  %54 = vmatprep.subr.bf16.mxu0 0
  %55 = vmatpush1.bf16.msra.mxu0 0
  %56 = vmatprep.subr.bf16.mxu0 0
  %57 = vmatpush1.bf16.msra.mxu0 0
  %58 = vmatprep.subr.bf16.mxu0 0
  %59 = vmatpush1.bf16.msra.mxu0 0
  %60 = vmatprep.subr.bf16.mxu0 0
  %61 = vmatpush1.bf16.msra.mxu0 0
  %62 = vmatprep.subr.bf16.mxu0 0
  %63 = vmatpush1.bf16.msra.mxu0 0
  %64 = vmatprep.subr.bf16.mxu0 0
  %65 = vmatpush1.bf16.msra.mxu0 0
  %66 = vmatprep.subr.bf16.mxu0 0
  %67 = vmatpush1.bf16.msra.mxu0 0
  %68 = vmatprep.subr.bf16.mxu0 0
  %69 = vmatpush1.bf16.msra.mxu0 0
  %70 = vmatprep.subr.bf16.mxu0 0
  %71 = vmatpush1.bf16.msra.mxu0 0
  %72 = vmatprep.subr.bf16.mxu0 0
  %73 = vmatpush1.bf16.msra.mxu0 0
  %74 = vmatprep.subr.bf16.mxu0 0
  %75 = vmatpush1.bf16.msra.mxu0 0
  %76 = vmatprep.subr.bf16.mxu0 0
  %77 = vmatpush1.bf16.msra.mxu0 0
  %78 = vmatprep.subr.bf16.mxu0 0
  %79 = vmatpush1.bf16.msra.mxu0 0
  %80 = vmatprep.subr.bf16.mxu0 0
  %81 = vmatpush1.bf16.msra.mxu0 0
  %82 = vmatprep.mubr.bf16.mxu0 0
  %83 = vmatmul.mubr.bf16.gmra.mrb[0].mxu0 %v48
  %v84 = vpop.f32.mrb[0].mxu0
  %v85 = vadd.f32 0.0, %v84
  %v86 = vpop.f32.mrb[0].mxu0
  %v87 = vpop.f32.mrb[0].mxu0
  %v88 = vadd.f32 0.0, %v87
  %v89 = vpop.f32.mrb[0].mxu0
  %90 = vdwg.mxu0
  %v91 = vadd.f32 %v21, %v85
  %v92 = vadd.f32 %v22, %v88
  %93 = vst [vmem:[#allocation2] sm:$0xff] %v91
  %94 = vst [vmem:[#allocation2 + $0x8] sm:$0xff] %v92
  // Predicated region
  $region18: #{forward.15} parent=0 // pred_check
    %p95 = pneg %p15
  $region19: #{forward.15} parent=0 // pred_check_branch
    %97 = sbr.rel (%p95) target = $region21
  $region20: #{forward.15} parent=0 // pred_region
    %v98 = vld [vmem:[#allocation2] sm:$0xff]
    %v99 = vld [vmem:[#allocation2 + $0x8] sm:$0xff]
    %v100 = vld [vmem:[%s2] sm:$0x1]
    %v102 = vlaneseq
    %v103 = vshrl.u32 %v102, 7
    %v104 = vsub.s32 0, %v103
    %v105 = vrot.slane %v100, %v104
    %v107 = vadd.f32 %v98, %v105
    %v108 = vadd.f32 %v99, %v105
    %v109 = vmax.f32 %v107, 0.0
    %v110 = vmax.f32 %v108, 0.0
    %v111 = vpack.c.bf16 %v110, %v109
    %v113 = vunpack.c.l.b16 %v111
    %v114 = vunpack.c.h.b16 %v111
    %v115 = vpack.c.b16 %v113, %v113
    %v116 = vpack.c.b16 %v114, %v114
    %119 = vst [vmem:[%s3] sm:$0xf] %v115
    %120 = vst [vmem:[%s3 + $0x4] sm:$0xf] %v116
  $region21: #{forward.15} parent=0 // pred_fallthru
    _
  // Predicated region
  $region22: #{forward.15} parent=0 // pred_check
    _
  $region23: #{forward.15} parent=0 // pred_check_branch
    %122 = sbr.rel (0) target = $region25
  $region24: #{forward.15} parent=0 // pred_region
    _
  $region25: #{forward.15} parent=0 // pred_fallthru
    _
  // Predicated region
  $region26: #{forward.15} parent=0 // pred_check
    _
  $region27: #{forward.15} parent=0 // pred_check_branch
    %124 = sbr.rel (0) target = $region29
  $region28: #{forward.15} parent=0 // pred_region
    _
  $region29: #{forward.15} parent=0 // pred_fallthru
    _

// kernel: forward.12
$region0: #{forward.12}
  #allocation0 [shape = 'u32[]', space=smem, size = 0x4, offset = 0x4, fixed_abs, tag = 'smem constant byte address 0x4 - core index']
  #allocation1 [shape = 'u32[144,128]{1,0:T(1,128)}', space=vmem, size = 0x12000, scoped, tag = 'internal scratch']
  #allocation2 [shape = 'f32[16,96]{1,0:T(8,128)}', space=vmem, size = 0x2000, scoped, tag = 'scratch operand']
  %s0 = inlined_call_operand.vmem [shape: bf16[16,32], index: 0, kind: input, shape index: {}]
  %s1 = inlined_call_operand.vmem [shape: bf16[32,96], index: 1, kind: input, shape index: {}]
  %s2 = inlined_call_operand.vmem [shape: f32[1,96], index: 2, kind: input, shape index: {}]
  %s3 = inlined_call_operand.vmem [shape: bf16[16,96], index: 3, kind: output, shape index: {}]
  %s4 = sld [smem:[#allocation0]]
  $region30: #{forward.12} parent=0
    _
  %s6 = ssub.s32 1, %s4
  %s7 = scalar_select 0, %s6, %s4
  // Predicated region
  $region2: #{forward.12} parent=0 // pred_check
    _
  $region3: #{forward.12} parent=0 // pred_check_branch
    %9 = sbr.rel (0) target = $region5
  $region4: #{forward.12} parent=0 // pred_region
    _
  $region5: #{forward.12} parent=0 // pred_fallthru
    _
  // Predicated region
  $region6: #{forward.12} parent=0 // pred_check
    _
  $region7: #{forward.12} parent=0 // pred_check_branch
    %11 = sbr.rel (0) target = $region9
  $region8: #{forward.12} parent=0 // pred_region
    _
  $region9: #{forward.12} parent=0 // pred_fallthru
    _
  // Predicated region
  $region10: #{forward.12} parent=0 // pred_check
    _
  $region11: #{forward.12} parent=0 // pred_check_branch
    %13 = sbr.rel (0) target = $region13
  $region12: #{forward.12} parent=0 // pred_region
    _
  $region13: #{forward.12} parent=0 // pred_fallthru
    _
  %p15 = scmp.eq.s32.totalorder 0, 0
  // Predicated region
  $region14: #{forward.12} parent=0 // pred_check
    %p16 = pneg %p15
  $region15: #{forward.12} parent=0 // pred_check_branch
    %18 = sbr.rel (%p16) target = $region17
  $region16: #{forward.12} parent=0 // pred_region
    %vm19 = vcmask 785408
    %20 = vst.msk [vmem:[#allocation2] sm:$0xff] %vm19, 0.0
    %21 = vst.msk [vmem:[#allocation2 + $0x8] sm:$0xff] %vm19, 0.0
  $region17: #{forward.12} parent=0 // pred_fallthru
    _
  %v22 = vld [vmem:[#allocation2] sm:$0xff]
  %v23 = vld [vmem:[#allocation2 + $0x8] sm:$0xff]
  %v24 = vld [vmem:[%s0] sm:$0xf]
  %v25 = vld [vmem:[%s0 + $0x4] sm:$0xf]
  %v26 = vld [vmem:[%s1] sm:$0xf]
  %v27 = vld [vmem:[%s1 + $0x4] sm:$0xf]
  %v28 = vld [vmem:[%s1 + $0x8] sm:$0xf]
  %v29 = vld [vmem:[%s1 + $0xc] sm:$0xf]
  %v32 = vunpack.c.l.b16 %v24
  %v33 = vunpack.c.l.b16 %v25
  %v34 = vpack.c.b16 %v33, %v32
  %v39 = vunpack.c.l.b16 %v26
  %v40 = vunpack.c.l.b16 %v27
  %v41 = vunpack.c.l.b16 %v28
  %v42 = vunpack.c.l.b16 %v29
  %v43 = vpack.c.b16 %v40, %v39
  %v44 = vpack.c.b16 %v42, %v41
  %vm47 = vcmask 261120
  %v49 = vsel %vm47, %v34, 0
  %51 = vmatprep.subr.bf16.mxu0 0
  %52 = vmatpush1.bf16.msra.mxu0 %v43
  %53 = vmatprep.subr.bf16.mxu0 0
  %54 = vmatpush1.bf16.msra.mxu0 %v44
  %55 = vmatprep.subr.bf16.mxu0 0
  %56 = vmatpush1.bf16.msra.mxu0 0
  %57 = vmatprep.subr.bf16.mxu0 0
  %58 = vmatpush1.bf16.msra.mxu0 0
  %59 = vmatprep.subr.bf16.mxu0 0
  %60 = vmatpush1.bf16.msra.mxu0 0
  %61 = vmatprep.subr.bf16.mxu0 0
  %62 = vmatpush1.bf16.msra.mxu0 0
  %63 = vmatprep.subr.bf16.mxu0 0
  %64 = vmatpush1.bf16.msra.mxu0 0
  %65 = vmatprep.subr.bf16.mxu0 0
  %66 = vmatpush1.bf16.msra.mxu0 0
  %67 = vmatprep.subr.bf16.mxu0 0
  %68 = vmatpush1.bf16.msra.mxu0 0
  %69 = vmatprep.subr.bf16.mxu0 0
  %70 = vmatpush1.bf16.msra.mxu0 0
  %71 = vmatprep.subr.bf16.mxu0 0
  %72 = vmatpush1.bf16.msra.mxu0 0
  %73 = vmatprep.subr.bf16.mxu0 0
  %74 = vmatpush1.bf16.msra.mxu0 0
  %75 = vmatprep.subr.bf16.mxu0 0
  %76 = vmatpush1.bf16.msra.mxu0 0
  %77 = vmatprep.subr.bf16.mxu0 0
  %78 = vmatpush1.bf16.msra.mxu0 0
  %79 = vmatprep.subr.bf16.mxu0 0
  %80 = vmatpush1.bf16.msra.mxu0 0
  %81 = vmatprep.subr.bf16.mxu0 0
  %82 = vmatpush1.bf16.msra.mxu0 0
  %83 = vmatprep.mubr.bf16.mxu0 0
  %84 = vmatmul.mubr.bf16.gmra.mrb[0].mxu0 %v49
  %v85 = vpop.f32.mrb[0].mxu0
  %v86 = vadd.f32 0.0, %v85
  %v87 = vpop.f32.mrb[0].mxu0
  %v88 = vpop.f32.mrb[0].mxu0
  %v89 = vadd.f32 0.0, %v88
  %v90 = vpop.f32.mrb[0].mxu0
  %91 = vdwg.mxu0
  %v92 = vadd.f32 %v22, %v86
  %v93 = vadd.f32 %v23, %v89
  %vm94 = vcmask 785408
  %95 = vst.msk [vmem:[#allocation2] sm:$0xff] %vm94, %v92
  %96 = vst.msk [vmem:[#allocation2 + $0x8] sm:$0xff] %vm94, %v93
  // Predicated region
  $region18: #{forward.12} parent=0 // pred_check
    %p97 = pneg %p15
  $region19: #{forward.12} parent=0 // pred_check_branch
    %99 = sbr.rel (%p97) target = $region21
  $region20: #{forward.12} parent=0 // pred_region
    %v100 = vld [vmem:[#allocation2] sm:$0xff]
    %v101 = vld [vmem:[#allocation2 + $0x8] sm:$0xff]
    %v102 = vld [vmem:[%s2] sm:$0x1]
    %v104 = vlaneseq
    %v105 = vshrl.u32 %v104, 7
    %v106 = vsub.s32 0, %v105
    %v107 = vrot.slane %v102, %v106
    %v109 = vadd.f32 %v100, %v107
    %v110 = vadd.f32 %v101, %v107
    %v111 = vpack.c.bf16 %v110, %v109
    %v113 = vunpack.c.l.b16 %v111
    %v114 = vunpack.c.h.b16 %v111
    %v115 = vpack.c.b16 %v113, %v113
    %v116 = vpack.c.b16 %v114, %v114
    %vm119 = vcmask 781312
    %120 = vst.msk [vmem:[%s3] sm:$0xf] %vm119, %v115
    %121 = vst.msk [vmem:[%s3 + $0x4] sm:$0xf] %vm119, %v116
  $region21: #{forward.12} parent=0 // pred_fallthru
    _
  // Predicated region
  $region22: #{forward.12} parent=0 // pred_check
    _
  $region23: #{forward.12} parent=0 // pred_check_branch
    %123 = sbr.rel (0) target = $region25
  $region24: #{forward.12} parent=0 // pred_region
    _
  $region25: #{forward.12} parent=0 // pred_fallthru
    _
  // Predicated region
  $region26: #{forward.12} parent=0 // pred_check
    _
  $region27: #{forward.12} parent=0 // pred_check_branch
    %125 = sbr.rel (0) target = $region29
  $region28: #{forward.12} parent=0 // pred_region
    _
  $region29: #{forward.12} parent=0 // pred_fallthru
    _

// kernel: forward.13
$region0: #{forward.13}
  #allocation0 [shape = 'u32[]', space=smem, size = 0x4, offset = 0x4, fixed_abs, tag = 'smem constant byte address 0x4 - core index']
  #allocation1 [shape = 'u32[144,128]{1,0:T(1,128)}', space=vmem, size = 0x12000, scoped, tag = 'internal scratch']
  #allocation2 [shape = 'f32[8,1]{1,0:T(8,128)}', space=vmem, size = 0x1000, scoped, tag = 'scratch operand']
  #allocation3 [shape = 'f32[8,1]{1,0:T(8,128)}', space=vmem, size = 0x1000, scoped, tag = 'scratch operand']
  #allocation4 [shape = 'f32[8,8]{1,0:T(8,128)}', space=vmem, size = 0x1000, scoped, tag = 'scratch operand']
  %s0 = inlined_call_operand.vmem [shape: bf16[2,4,8,8], index: 0, kind: input, shape index: {}]
  %s1 = inlined_call_operand.vmem [shape: bf16[2,4,8,8], index: 1, kind: input, shape index: {}]
  %s2 = inlined_call_operand.vmem [shape: bf16[2,4,8,8], index: 2, kind: input, shape index: {}]
  %s3 = inlined_call_operand.vmem [shape: bf16[2,4,8,8], index: 3, kind: output, shape index: {}]
  %s4 = sld [smem:[#allocation0]]
  $region57: #{forward.13} parent=0
    _
  %s6 = ssub.s32 1, %s4
  %s7 = scalar_select 0, %s6, %s4
  loop: start=0, step=1, limit=10
  $region2: #{forward.13} parent=0 // loop_pre_header
    _
  $region3: #{forward.13} parent=0 // loop_header
    %s9 = sphi 0, %s13
    %p10 = scmp.ge.s32.totalorder %s9, 10
    %s16 = sphi 0, %s42
    %s17 = sphi 0, %s38
    %s18 = sphi 0, %s34
    %s19 = sphi 0, %s30
    %s20 = sphi 0, %s16
    %s21 = sphi 0, %s17
    %s22 = sphi 0, %s18
    %s23 = sphi 0, %s19
    %s24 = sphi 0, %s20
    %s25 = sphi 0, %s21
    %s26 = sphi 0, %s22
    %s27 = sphi 0, %s23
    %s49 = sphi 0, %s51
    %s52 = sphi 0, %s49
    %s53 = sphi 0, %s52
    %s69 = sphi 0, %s53
    %s79 = sphi 0, %s81
    %s82 = sphi 0, %s79
    %s83 = sphi 0, %s82
    %s99 = sphi 0, %s83
    %s109 = sphi 0, %s111
    %s112 = sphi 0, %s109
    %s113 = sphi 0, %s112
    %s129 = sphi 0, %s113
    %s139 = sphi 0, %s141
    %s142 = sphi 0, %s139
    %s143 = sphi 0, %s142
    %s159 = sphi 0, %s143
  $region4: #{forward.13} parent=0 // loop_header_branch
    %12 = sbr.rel (%p10) target = $region8
  $region5: #{forward.13} parent=0 // loop_body
    %s14 = ssub.s32 %s9, 1
    %s15 = ssub.s32 %s9, 2
    %s28 = sadd.s32 1, %s19
    %p29 = scmp.ge.s32.totalorder %s28, 1
    %s30 = scalar_select %p29, 0, %s28
    %s31 = sadd.s32 1, %s18
    %s32 = scalar_select %p29, %s31, %s18
    %p33 = scmp.ge.s32.totalorder %s32, 1
    %s34 = scalar_select %p33, 0, %s32
    %s35 = sadd.s32 1, %s17
    %s36 = scalar_select %p33, %s35, %s17
    %p37 = scmp.ge.s32.totalorder %s36, 4
    %s38 = scalar_select %p37, 0, %s36
    %s39 = sadd.s32 1, %s16
    %s40 = scalar_select %p37, %s39, %s16
    %p41 = scmp.ge.s32.totalorder %s40, 2
    %s42 = scalar_select %p41, 0, %s40
    %s43 = ssub.s32 %s16, %s42
    %s44 = ssub.s32 %s17, %s38
    %s45 = sor.u32 %s43, %s44
    %s46 = ssub.s32 %s18, %s34
    %s47 = sor.u32 %s45, %s46
    %p48 = scmp.eq.s32.totalorder %s47, 0
    %s50 = sadd.s32 %s49, 1
    %s51 = scalar_select %p48, %s49, %s50
    %p54 = pneg %p48
    %p55 = scmp.eq.s32.totalorder %s9, 7
    %p56 = por %p54, %p55
    %p57 = scmp.ne.s32.totalorder %s49, %s52
    %p58 = scmp.eq.s32.totalorder %s9, 0
    %p59 = por %p57, %p58
    %p60 = scmp.ne.s32.totalorder %s49, %s52
    %p61 = scmp.eq.s32.totalorder %s14, 7
    %p62 = por %p60, %p61
    %p63 = scmp.ne.s32.totalorder %s52, %s53
    %p64 = scmp.eq.s32.totalorder %s14, 0
    %p65 = por %p63, %p64
    %p66 = scmp.ne.s32.totalorder %s52, %s53
    %p67 = scmp.eq.s32.totalorder %s15, 7
    %p68 = por %p66, %p67
    %p70 = scmp.ne.s32.totalorder %s53, %s69
    %p71 = scmp.eq.s32.totalorder %s15, 0
    %p72 = por %p70, %p71
    %s73 = ssub.s32 %s16, %s42
    %s74 = ssub.s32 %s17, %s38
    %s75 = sor.u32 %s73, %s74
    %s76 = ssub.s32 %s19, %s30
    %s77 = sor.u32 %s75, %s76
    %p78 = scmp.eq.s32.totalorder %s77, 0
    %s80 = sadd.s32 %s79, 1
    %s81 = scalar_select %p78, %s79, %s80
    %p84 = pneg %p78
    %p85 = scmp.eq.s32.totalorder %s9, 7
    %p86 = por %p84, %p85
    %p87 = scmp.ne.s32.totalorder %s79, %s82
    %p88 = scmp.eq.s32.totalorder %s9, 0
    %p89 = por %p87, %p88
    %p90 = scmp.ne.s32.totalorder %s79, %s82
    %p91 = scmp.eq.s32.totalorder %s14, 7
    %p92 = por %p90, %p91
    %p93 = scmp.ne.s32.totalorder %s82, %s83
    %p94 = scmp.eq.s32.totalorder %s14, 0
    %p95 = por %p93, %p94
    %p96 = scmp.ne.s32.totalorder %s82, %s83
    %p97 = scmp.eq.s32.totalorder %s15, 7
    %p98 = por %p96, %p97
    %p100 = scmp.ne.s32.totalorder %s83, %s99
    %p101 = scmp.eq.s32.totalorder %s15, 0
    %p102 = por %p100, %p101
    %s103 = ssub.s32 %s16, %s42
    %s104 = ssub.s32 %s17, %s38
    %s105 = sor.u32 %s103, %s104
    %s106 = ssub.s32 %s19, %s30
    %s107 = sor.u32 %s105, %s106
    %p108 = scmp.eq.s32.totalorder %s107, 0
    %s110 = sadd.s32 %s109, 1
    %s111 = scalar_select %p108, %s109, %s110
    %p114 = pneg %p108
    %p115 = scmp.eq.s32.totalorder %s9, 7
    %p116 = por %p114, %p115
    %p117 = scmp.ne.s32.totalorder %s109, %s112
    %p118 = scmp.eq.s32.totalorder %s9, 0
    %p119 = por %p117, %p118
    %p120 = scmp.ne.s32.totalorder %s109, %s112
    %p121 = scmp.eq.s32.totalorder %s14, 7
    %p122 = por %p120, %p121
    %p123 = scmp.ne.s32.totalorder %s112, %s113
    %p124 = scmp.eq.s32.totalorder %s14, 0
    %p125 = por %p123, %p124
    %p126 = scmp.ne.s32.totalorder %s112, %s113
    %p127 = scmp.eq.s32.totalorder %s15, 7
    %p128 = por %p126, %p127
    %p130 = scmp.ne.s32.totalorder %s113, %s129
    %p131 = scmp.eq.s32.totalorder %s15, 0
    %p132 = por %p130, %p131
    %s133 = ssub.s32 %s16, %s42
    %s134 = ssub.s32 %s17, %s38
    %s135 = sor.u32 %s133, %s134
    %s136 = ssub.s32 %s18, %s34
    %s137 = sor.u32 %s135, %s136
    %p138 = scmp.eq.s32.totalorder %s137, 0
    %s140 = sadd.s32 %s139, 1
    %s141 = scalar_select %p138, %s139, %s140
    %p144 = pneg %p138
    %p145 = scmp.eq.s32.totalorder %s9, 7
    %p146 = por %p144, %p145
    %p147 = scmp.ne.s32.totalorder %s139, %s142
    %p148 = scmp.eq.s32.totalorder %s9, 0
    %p149 = por %p147, %p148
    %p150 = scmp.ne.s32.totalorder %s139, %s142
    %p151 = scmp.eq.s32.totalorder %s14, 7
    %p152 = por %p150, %p151
    %p153 = scmp.ne.s32.totalorder %s142, %s143
    %p154 = scmp.eq.s32.totalorder %s14, 0
    %p155 = por %p153, %p154
    %p156 = scmp.ne.s32.totalorder %s142, %s143
    %p157 = scmp.eq.s32.totalorder %s15, 7
    %p158 = por %p156, %p157
    %p160 = scmp.ne.s32.totalorder %s143, %s159
    %p161 = scmp.eq.s32.totalorder %s15, 0
    %p162 = por %p160, %p161
    %p163 = scmp.le.s32.totalorder 1, %s9
    %p164 = scmp.lt.s32.totalorder %s9, 9
    %p165 = pnand %p163, %p164
    %p166 = pneg %p165
    // Predicated region
    $region9: #{forward.13} parent=5 // pred_check
      _
    $region10: #{forward.13} parent=5 // pred_check_branch
      %168 = sbr.rel (%p165) target = $region12
    $region11: #{forward.13} parent=5 // pred_region
      %s169 = ssub.s32 %s9, 1
    $region12: #{forward.13} parent=5 // pred_fallthru
      _
    %p170 = scmp.lt.s32.totalorder %s9, 8
    // Predicated region
    $region13: #{forward.13} parent=5 // pred_check
      %p171 = pneg %p170
    $region14: #{forward.13} parent=5 // pred_check_branch
      %173 = sbr.rel (%p171) target = $region16
    $region15: #{forward.13} parent=5 // pred_region
      // Predicated region
      $region17: #{forward.13} parent=15 // pred_check
        %p174 = pneg %p59
      $region18: #{forward.13} parent=15 // pred_check_branch
        %176 = sbr.rel (%p174) target = $region20
      $region19: #{forward.13} parent=15 // pred_region
        %p177 = scmp.lt.s32.totalorder %s16, 1
        %s178 = scalar_select %p177, %s16, 1
        %p179 = scmp.lt.s32.totalorder %s17, 3
        %s180 = scalar_select %p179, %s17, 3
        %p181 = scmp.lt.s32.totalorder %s18, 0
        %s182 = scalar_select %p181, %s18, 0
        %s183 = sadd.s32 %s182, %s180
        %s184 = smul.addr %s178, 4
        %s185 = sadd.s32 %s183, %s184
        %s186 = smul.addr %s185, 4
        %s187 = scalar_lea.vmem %s0, %s186
      $region20: #{forward.13} parent=15 // pred_fallthru
        _
      // Predicated region
      $region21: #{forward.13} parent=15 // pred_check
        %p188 = pneg %p89
      $region22: #{forward.13} parent=15 // pred_check_branch
        %190 = sbr.rel (%p188) target = $region24
      $region23: #{forward.13} parent=15 // pred_region
        %p191 = scmp.lt.s32.totalorder %s16, 1
        %s192 = scalar_select %p191, %s16, 1
        %p193 = scmp.lt.s32.totalorder %s17, 3
        %s194 = scalar_select %p193, %s17, 3
        %p195 = scmp.lt.s32.totalorder %s19, 0
        %s196 = scalar_select %p195, %s19, 0
        %s197 = sadd.s32 %s196, %s194
        %s198 = smul.addr %s192, 4
        %s199 = sadd.s32 %s197, %s198
        %s200 = smul.addr %s199, 4
        %s201 = scalar_lea.vmem %s1, %s200
      $region24: #{forward.13} parent=15 // pred_fallthru
        _
      // Predicated region
      $region25: #{forward.13} parent=15 // pred_check
        %p202 = pneg %p119
      $region26: #{forward.13} parent=15 // pred_check_branch
        %204 = sbr.rel (%p202) target = $region28
      $region27: #{forward.13} parent=15 // pred_region
        %p205 = scmp.lt.s32.totalorder %s16, 1
        %s206 = scalar_select %p205, %s16, 1
        %p207 = scmp.lt.s32.totalorder %s17, 3
        %s208 = scalar_select %p207, %s17, 3
        %p209 = scmp.lt.s32.totalorder %s19, 0
        %s210 = scalar_select %p209, %s19, 0
        %s211 = sadd.s32 %s210, %s208
        %s212 = smul.addr %s206, 4
        %s213 = sadd.s32 %s211, %s212
        %s214 = smul.addr %s213, 4
        %s215 = scalar_lea.vmem %s2, %s214
      $region28: #{forward.13} parent=15 // pred_fallthru
        _
    $region16: #{forward.13} parent=5 // pred_fallthru
      _
    %p216 = scmp.le.s32.totalorder 1, %s9
    %p217 = scmp.lt.s32.totalorder %s9, 9
    %p218 = pnand %p216, %p217
    %p219 = pneg %p218
    // Predicated region
    $region29: #{forward.13} parent=5 // pred_check
      _
    $region30: #{forward.13} parent=5 // pred_check_branch
      %221 = sbr.rel (%p218) target = $region32
    $region31: #{forward.13} parent=5 // pred_region
      %s222 = ssub.s32 %s9, 1
      %p223 = scmp.lt.s32.totalorder %s20, 1
      %s224 = scalar_select %p223, %s20, 1
      %p225 = scmp.lt.s32.totalorder %s21, 3
      %s226 = scalar_select %p225, %s21, 3
      %p227 = scmp.lt.s32.totalorder %s22, 0
      %s228 = scalar_select %p227, %s22, 0
      %s229 = sadd.s32 %s228, %s226
      %s230 = smul.addr %s224, 4
      %s231 = sadd.s32 %s229, %s230
      %s232 = smul.addr %s231, 4
      %s233 = scalar_lea.vmem %s0, %s232
      %p234 = pneg %p65
      %p235 = pneg %p62
      %p236 = scmp.lt.s32.totalorder %s20, 1
      %s237 = scalar_select %p236, %s20, 1
      %p238 = scmp.lt.s32.totalorder %s21, 3
      %s239 = scalar_select %p238, %s21, 3
      %p240 = scmp.lt.s32.totalorder %s23, 0
      %s241 = scalar_select %p240, %s23, 0
      %s242 = sadd.s32 %s241, %s239
      %s243 = smul.addr %s237, 4
      %s244 = sadd.s32 %s242, %s243
      %s245 = smul.addr %s244, 4
      %s246 = scalar_lea.vmem %s1, %s245
      %p247 = pneg %p95
      %p248 = pneg %p92
      %p249 = scmp.lt.s32.totalorder %s20, 1
      %s250 = scalar_select %p249, %s20, 1
      %p251 = scmp.lt.s32.totalorder %s21, 3
      %s252 = scalar_select %p251, %s21, 3
      %p253 = scmp.lt.s32.totalorder %s23, 0
      %s254 = scalar_select %p253, %s23, 0
      %s255 = sadd.s32 %s254, %s252
      %s256 = smul.addr %s250, 4
      %s257 = sadd.s32 %s255, %s256
      %s258 = smul.addr %s257, 4
      %s259 = scalar_lea.vmem %s2, %s258
      %p260 = pneg %p125
      %p261 = pneg %p122
      %p262 = pneg %p155
      %p263 = pneg %p152
      %p264 = scmp.lt.s32.totalorder %s20, 1
      %s265 = scalar_select %p264, %s20, 1
      %p266 = scmp.lt.s32.totalorder %s21, 3
      %s267 = scalar_select %p266, %s21, 3
      %p268 = scmp.lt.s32.totalorder %s22, 0
      %s269 = scalar_select %p268, %s22, 0
      %s270 = sadd.s32 %s269, %s267
      %s271 = smul.addr %s265, 4
      %s272 = sadd.s32 %s270, %s271
      %s273 = smul.addr %s272, 4
      %s274 = scalar_lea.vmem %s3, %s273
      %p275 = scmp.lt.s32.totalorder %s20, 1
      %s276 = scalar_select %p275, %s20, 1
      %p277 = scmp.lt.s32.totalorder %s21, 3
      %s278 = scalar_select %p277, %s21, 3
      %p279 = scmp.lt.s32.totalorder %s22, 0
      %s280 = scalar_select %p279, %s22, 0
      %s281 = sadd.s32 %s280, %s278
      %s282 = smul.addr %s276, 4
      %s283 = sadd.s32 %s281, %s282
      %s284 = smul.addr %s283, 4
      %s285 = scalar_lea.vmem %s0, %s284
      %p286 = scmp.lt.s32.totalorder %s20, 1
      %s287 = scalar_select %p286, %s20, 1
      %p288 = scmp.lt.s32.totalorder %s21, 3
      %s289 = scalar_select %p288, %s21, 3
      %p290 = scmp.lt.s32.totalorder %s23, 0
      %s291 = scalar_select %p290, %s23, 0
      %s292 = sadd.s32 %s291, %s289
      %s293 = smul.addr %s287, 4
      %s294 = sadd.s32 %s292, %s293
      %s295 = smul.addr %s294, 4
      %s296 = scalar_lea.vmem %s1, %s295
      %p297 = scmp.lt.s32.totalorder %s20, 1
      %s298 = scalar_select %p297, %s20, 1
      %p299 = scmp.lt.s32.totalorder %s21, 3
      %s300 = scalar_select %p299, %s21, 3
      %p301 = scmp.lt.s32.totalorder %s23, 0
      %s302 = scalar_select %p301, %s23, 0
      %s303 = sadd.s32 %s302, %s300
      %s304 = smul.addr %s298, 4
      %s305 = sadd.s32 %s303, %s304
      %s306 = smul.addr %s305, 4
      %s307 = scalar_lea.vmem %s2, %s306
      %p308 = scmp.lt.s32.totalorder %s20, 1
      %s309 = scalar_select %p308, %s20, 1
      %p310 = scmp.lt.s32.totalorder %s21, 3
      %s311 = scalar_select %p310, %s21, 3
      %p312 = scmp.lt.s32.totalorder %s22, 0
      %s313 = scalar_select %p312, %s22, 0
      %s314 = sadd.s32 %s313, %s311
      %s315 = smul.addr %s309, 4
      %s316 = sadd.s32 %s314, %s315
      %s317 = smul.addr %s316, 4
      %s318 = scalar_lea.vmem %s3, %s317
      %p320 = scmp.eq.s32.totalorder %s23, 0
      // Predicated region
      $region33: #{forward.13} parent=31 // pred_check
        %p321 = pneg %p320
      $region34: #{forward.13} parent=31 // pred_check_branch
        %323 = sbr.rel (%p321) target = $region36
      $region35: #{forward.13} parent=31 // pred_region
        %vm324 = vcmask 7168
        %325 = vst.msk [vmem:[#allocation2] sm:$0xff] %vm324, -1e+30
        %326 = vst.msk [vmem:[#allocation3] sm:$0xff] %vm324, 0.0
        %vm327 = vcmask 64512
        %328 = vst.msk [vmem:[#allocation4] sm:$0xff] %vm327, 0.0
      $region36: #{forward.13} parent=31 // pred_fallthru
        _
      %s329 = smul.u32 %s23, 8
      %s330 = smul.u32 %s22, 8
      %s331 = sadd.s32 %s330, 7
      %p332 = scmp.le.s32.totalorder %s329, %s331
      // Predicated region
      $region37: #{forward.13} parent=31 // pred_check
        %p333 = pneg %p332
      $region38: #{forward.13} parent=31 // pred_check_branch
        %335 = sbr.rel (%p333) target = $region40
      $region39: #{forward.13} parent=31 // pred_region
        %v336 = vld [vmem:[%s285] sm:$0xf]
        %v337 = vld [vmem:[%s296] sm:$0xf]
        %v338 = vld [vmem:[%s307] sm:$0xf]
        %vm339 = vcmask 64512
        %v341 = vsel %vm339, %v336, 0
        %v344 = vsel %vm339, %v337, 0
        %346 = vmatprep.subr.bf16.mxu0 0
        %347 = vmatpush1.bf16.xpose.msra.mxu0 %v344
        %348 = vmatprep.subr.bf16.mxu0 0
        %349 = vmatpush1.bf16.xpose.msra.mxu0 0
        %350 = vmatprep.subr.bf16.mxu0 0
        %351 = vmatpush1.bf16.xpose.msra.mxu0 0
        %352 = vmatprep.subr.bf16.mxu0 0
        %353 = vmatpush1.bf16.xpose.msra.mxu0 0
        %354 = vmatprep.subr.bf16.mxu0 0
        %355 = vmatpush1.bf16.xpose.msra.mxu0 0
        %356 = vmatprep.subr.bf16.mxu0 0
        %357 = vmatpush1.bf16.xpose.msra.mxu0 0
        %358 = vmatprep.subr.bf16.mxu0 0
        %359 = vmatpush1.bf16.xpose.msra.mxu0 0
        %360 = vmatprep.subr.bf16.mxu0 0
        %361 = vmatpush1.bf16.xpose.msra.mxu0 0
        %362 = vmatprep.subr.bf16.mxu0 0
        %363 = vmatpush1.bf16.xpose.msra.mxu0 0
        %364 = vmatprep.subr.bf16.mxu0 0
        %365 = vmatpush1.bf16.xpose.msra.mxu0 0
        %366 = vmatprep.subr.bf16.mxu0 0
        %367 = vmatpush1.bf16.xpose.msra.mxu0 0
        %368 = vmatprep.subr.bf16.mxu0 0
        %369 = vmatpush1.bf16.xpose.msra.mxu0 0
        %370 = vmatprep.subr.bf16.mxu0 0
        %371 = vmatpush1.bf16.xpose.msra.mxu0 0
        %372 = vmatprep.subr.bf16.mxu0 0
        %373 = vmatpush1.bf16.xpose.msra.mxu0 0
        %374 = vmatprep.subr.bf16.mxu0 0
        %375 = vmatpush1.bf16.xpose.msra.mxu0 0
        %376 = vmatprep.subr.bf16.mxu0 0
        %377 = vmatpush1.bf16.xpose.msra.mxu0 0
        %378 = vmatprep.mubr.bf16.mxu0 0
        %379 = vmatmul.mubr.bf16.gmra.mrb[0].mxu0 %v341
        %v380 = vpop.f32.mrb[0].mxu0
        %v381 = vadd.f32 0.0, %v380
        %v382 = vpop.f32.mrb[0].mxu0
        %v383 = vpop.f32.mrb[0].mxu0
        %v384 = vpop.f32.mrb[0].mxu0
        %385 = vdwg.mxu0
        %v386 = vmul.f32 %v381, 0.35355338
        %v387 = vlaneseq
        %v388 = vshrl.u32 %v387, 7
        %v389 = vstv %s330
        %v390 = vadd.s32 %v389, %v388
        %v391 = vlaneseq
        %v392 = vand.u32 %v391, 127
        %v393 = vstv %s329
        %v394 = vadd.s32 %v393, %v392
        %vm395 = vcmp.le.s32.totalorder %v394, %v390
        %v396 = vsel %vm395, %v386, -1e+30
        %v397 = vld [vmem:[#allocation2] sm:$0xff]
        %v398 = vsel %vm339, %v396, -inf
        %399 = vmax.xlane.f32.xlu0 %v398
        %v400 = vpop.xlane.xlu0 %399
        %v401 = vmax.f32 %v397, %v400
        %v402 = vsub.f32 %v397, %v401
        %v403 = vmul.f32 %v402, 1.442695
        %v404 = vpow.pop %v403
        %406 = vset.pattern.permute.xlu0 0
        %407 = vperm.xlu0 %406, %v401
        %v408 = vpop.permute.xlu0 %407
        %v410 = vsub.f32 %v396, %v408
        %v411 = vmul.f32 %v410, 1.442695
        %v412 = vpow.pop %v411
        %v413 = vld [vmem:[#allocation3] sm:$0xff]
        %v414 = vmul.f32 %v404, %v413
        %v415 = vsel %vm339, %v412, 0.0
        %416 = vadd.xlane.f32.xlu0 %v415
        %v417 = vpop.xlane.xlu0 %416
        %v418 = vadd.f32 %v414, %v417
        %vm419 = vcmask 7168
        %420 = vst.msk [vmem:[#allocation3] sm:$0xff] %vm419, %v418
        %v421 = vld [vmem:[#allocation4] sm:$0xff]
        %423 = vset.pattern.permute.xlu0 0
        %424 = vperm.xlu0 %423, %v404
        %v425 = vpop.permute.xlu0 %424
        %v427 = vmul.f32 %v425, %v421
        %v428 = vpack.c.bf16 %v412, %v412
        %v430 = vsel %vm339, %v428, 0
        %vm432 = vcmask 1043456
        %v434 = vsel %vm432, %v338, 0
        %436 = vmatprep.subr.bf16.mxu0 0
        %437 = vmatpush1.bf16.msra.mxu0 %v434
        %438 = vmatprep.subr.bf16.mxu0 0
        %439 = vmatpush1.bf16.msra.mxu0 0
        %440 = vmatprep.subr.bf16.mxu0 0
        %441 = vmatpush1.bf16.msra.mxu0 0
        %442 = vmatprep.subr.bf16.mxu0 0
        %443 = vmatpush1.bf16.msra.mxu0 0
        %444 = vmatprep.subr.bf16.mxu0 0
        %445 = vmatpush1.bf16.msra.mxu0 0
        %446 = vmatprep.subr.bf16.mxu0 0
        %447 = vmatpush1.bf16.msra.mxu0 0
        %448 = vmatprep.subr.bf16.mxu0 0
        %449 = vmatpush1.bf16.msra.mxu0 0
        %450 = vmatprep.subr.bf16.mxu0 0
        %451 = vmatpush1.bf16.msra.mxu0 0
        %452 = vmatprep.subr.bf16.mxu0 0
        %453 = vmatpush1.bf16.msra.mxu0 0
        %454 = vmatprep.subr.bf16.mxu0 0
        %455 = vmatpush1.bf16.msra.mxu0 0
        %456 = vmatprep.subr.bf16.mxu0 0
        %457 = vmatpush1.bf16.msra.mxu0 0
        %458 = vmatprep.subr.bf16.mxu0 0
        %459 = vmatpush1.bf16.msra.mxu0 0
        %460 = vmatprep.subr.bf16.mxu0 0
        %461 = vmatpush1.bf16.msra.mxu0 0
        %462 = vmatprep.subr.bf16.mxu0 0
        %463 = vmatpush1.bf16.msra.mxu0 0
        %464 = vmatprep.subr.bf16.mxu0 0
        %465 = vmatpush1.bf16.msra.mxu0 0
        %466 = vmatprep.subr.bf16.mxu0 0
        %467 = vmatpush1.bf16.msra.mxu0 0
        %468 = vmatprep.mubr.bf16.mxu0 0
        %469 = vmatmul.mubr.bf16.gmra.mrb[0].mxu0 %v430
        %v470 = vpop.f32.mrb[0].mxu0
        %v471 = vadd.f32 0.0, %v470
        %v472 = vpop.f32.mrb[0].mxu0
        %v473 = vpop.f32.mrb[0].mxu0
        %v474 = vpop.f32.mrb[0].mxu0
        %475 = vdwg.mxu0
        %v476 = vadd.f32 %v427, %v471
        %477 = vst.msk [vmem:[#allocation4] sm:$0xff] %vm339, %v476
        %478 = vst.msk [vmem:[#allocation2] sm:$0xff] %vm419, %v401
      $region40: #{forward.13} parent=31 // pred_fallthru
        _
      // Predicated region
      $region41: #{forward.13} parent=31 // pred_check
        %p479 = pneg %p320
      $region42: #{forward.13} parent=31 // pred_check_branch
        %481 = sbr.rel (%p479) target = $region44
      $region43: #{forward.13} parent=31 // pred_region
        %v482 = vld [vmem:[#allocation4] sm:$0xff]
        %v483 = vld [vmem:[#allocation3] sm:$0xff]
        %v484 = vrcp.pop %v483
        %486 = vset.pattern.permute.xlu0 0
        %487 = vperm.xlu0 %486, %v484
        %v488 = vpop.permute.xlu0 %487
        %v490 = vmul.f32 %v482, %v488
        %v491 = vpack.c.bf16 %v490, %v490
        %vm492 = vcmask 60416
        %493 = vst.msk [vmem:[%s318] sm:$0xf] %vm492, %v491
      $region44: #{forward.13} parent=31 // pred_fallthru
        _
      %p494 = scmp.lt.s32.totalorder %s20, 1
      %s495 = scalar_select %p494, %s20, 1
      %p496 = scmp.lt.s32.totalorder %s21, 3
      %s497 = scalar_select %p496, %s21, 3
      %p498 = scmp.lt.s32.totalorder %s22, 0
      %s499 = scalar_select %p498, %s22, 0
      %s500 = sadd.s32 %s499, %s497
      %s501 = smul.addr %s495, 4
      %s502 = sadd.s32 %s500, %s501
      %s503 = smul.addr %s502, 4
      %s504 = scalar_lea.vmem %s3, %s503
      // Predicated region
      $region45: #{forward.13} parent=31 // pred_check
        %p505 = pneg %p152
      $region46: #{forward.13} parent=31 // pred_check_branch
        %507 = sbr.rel (%p505) target = $region48
      $region47: #{forward.13} parent=31 // pred_region
        _
      $region48: #{forward.13} parent=31 // pred_fallthru
        _
    $region32: #{forward.13} parent=5 // pred_fallthru
      _
    %p508 = scmp.le.s32.totalorder 2, %s9
    // Predicated region
    $region49: #{forward.13} parent=5 // pred_check
      %p509 = pneg %p508
    $region50: #{forward.13} parent=5 // pred_check_branch
      %511 = sbr.rel (%p509) target = $region52
    $region51: #{forward.13} parent=5 // pred_region
      %s512 = ssub.s32 %s9, 2
      // Predicated region
      $region53: #{forward.13} parent=51 // pred_check
        %p513 = pneg %p158
      $region54: #{forward.13} parent=51 // pred_check_branch
        %515 = sbr.rel (%p513) target = $region56
      $region55: #{forward.13} parent=51 // pred_region
        %p516 = scmp.lt.s32.totalorder %s24, 1
        %s517 = scalar_select %p516, %s24, 1
        %p518 = scmp.lt.s32.totalorder %s25, 3
        %s519 = scalar_select %p518, %s25, 3
        %p520 = scmp.lt.s32.totalorder %s26, 0
        %s521 = scalar_select %p520, %s26, 0
        %s522 = sadd.s32 %s521, %s519
        %s523 = smul.addr %s517, 4
        %s524 = sadd.s32 %s522, %s523
        %s525 = smul.addr %s524, 4
        %s526 = scalar_lea.vmem %s3, %s525
      $region56: #{forward.13} parent=51 // pred_fallthru
        _
    $region52: #{forward.13} parent=5 // pred_fallthru
      _
  $region6: #{forward.13} parent=0 // loop_footer
    %s13 = sadd.s32 1, %s9
  $region7: #{forward.13} parent=0 // loop_footer_branch
    %8 = sbr.rel target = $region3
  $region8: #{forward.13} parent=0 // loop_exit
    _

// kernel: forward.14
$region0: #{forward.14}
  #allocation0 [shape = 'u32[]', space=smem, size = 0x4, offset = 0x4, fixed_abs, tag = 'smem constant byte address 0x4 - core index']
  #allocation1 [shape = 'u32[144,128]{1,0:T(1,128)}', space=vmem, size = 0x12000, scoped, tag = 'internal scratch']
  #allocation2 [shape = 'f32[16,32]{1,0:T(8,128)}', space=vmem, size = 0x2000, scoped, tag = 'scratch operand']
  %s0 = inlined_call_operand.vmem [shape: bf16[16,32], index: 0, kind: input, shape index: {}]
  %s1 = inlined_call_operand.vmem [shape: bf16[32,32], index: 1, kind: input, shape index: {}]
  %s2 = inlined_call_operand.vmem [shape: f32[1,32], index: 2, kind: input, shape index: {}]
  %s3 = inlined_call_operand.vmem [shape: bf16[16,32], index: 3, kind: input, shape index: {}]
  %s4 = inlined_call_operand.vmem [shape: f32[1,32], index: 4, kind: input, shape index: {}]
  %s5 = inlined_call_operand.vmem [shape: f32[1,32], index: 5, kind: input, shape index: {}]
  %s6 = inlined_call_operand.vmem [shape: bf16[16,32], index: 6, kind: output, shape index: {}]
  %s7 = sld [smem:[#allocation0]]
  $region42: #{forward.14} parent=0
    _
  %s9 = ssub.s32 1, %s7
  %s10 = scalar_select 0, %s9, %s7
  // Predicated region
  $region2: #{forward.14} parent=0 // pred_check
    _
  $region3: #{forward.14} parent=0 // pred_check_branch
    %12 = sbr.rel (0) target = $region5
  $region4: #{forward.14} parent=0 // pred_region
    _
  $region5: #{forward.14} parent=0 // pred_fallthru
    _
  // Predicated region
  $region6: #{forward.14} parent=0 // pred_check
    _
  $region7: #{forward.14} parent=0 // pred_check_branch
    %14 = sbr.rel (0) target = $region9
  $region8: #{forward.14} parent=0 // pred_region
    _
  $region9: #{forward.14} parent=0 // pred_fallthru
    _
  // Predicated region
  $region10: #{forward.14} parent=0 // pred_check
    _
  $region11: #{forward.14} parent=0 // pred_check_branch
    %16 = sbr.rel (0) target = $region13
  $region12: #{forward.14} parent=0 // pred_region
    _
  $region13: #{forward.14} parent=0 // pred_fallthru
    _
  // Predicated region
  $region14: #{forward.14} parent=0 // pred_check
    _
  $region15: #{forward.14} parent=0 // pred_check_branch
    %18 = sbr.rel (0) target = $region17
  $region16: #{forward.14} parent=0 // pred_region
    _
  $region17: #{forward.14} parent=0 // pred_fallthru
    _
  // Predicated region
  $region18: #{forward.14} parent=0 // pred_check
    _
  $region19: #{forward.14} parent=0 // pred_check_branch
    %20 = sbr.rel (0) target = $region21
  $region20: #{forward.14} parent=0 // pred_region
    _
  $region21: #{forward.14} parent=0 // pred_fallthru
    _
  // Predicated region
  $region22: #{forward.14} parent=0 // pred_check
    _
  $region23: #{forward.14} parent=0 // pred_check_branch
    %22 = sbr.rel (0) target = $region25
  $region24: #{forward.14} parent=0 // pred_region
    _
  $region25: #{forward.14} parent=0 // pred_fallthru
    _
  %p24 = scmp.eq.s32.totalorder 0, 0
  // Predicated region
  $region26: #{forward.14} parent=0 // pred_check
    %p25 = pneg %p24
  $region27: #{forward.14} parent=0 // pred_check_branch
    %27 = sbr.rel (%p25) target = $region29
  $region28: #{forward.14} parent=0 // pred_region
    %vm28 = vcmask 261120
    %29 = vst.msk [vmem:[#allocation2] sm:$0xff] %vm28, 0.0
    %30 = vst.msk [vmem:[#allocation2 + $0x8] sm:$0xff] %vm28, 0.0
  $region29: #{forward.14} parent=0 // pred_fallthru
    _
  %v31 = vld [vmem:[#allocation2] sm:$0xff]
  %v32 = vld [vmem:[#allocation2 + $0x8] sm:$0xff]
  %v33 = vld [vmem:[%s0] sm:$0xf]
  %v34 = vld [vmem:[%s0 + $0x4] sm:$0xf]
  %v35 = vld [vmem:[%s1] sm:$0xf]
  %v36 = vld [vmem:[%s1 + $0x4] sm:$0xf]
  %v37 = vld [vmem:[%s1 + $0x8] sm:$0xf]
  %v38 = vld [vmem:[%s1 + $0xc] sm:$0xf]
  %v41 = vunpack.c.l.b16 %v33
  %v42 = vunpack.c.l.b16 %v34
  %v43 = vpack.c.b16 %v42, %v41
  %v48 = vunpack.c.l.b16 %v35
  %v49 = vunpack.c.l.b16 %v36
  %v50 = vunpack.c.l.b16 %v37
  %v51 = vunpack.c.l.b16 %v38
  %v52 = vpack.c.b16 %v49, %v48
  %v53 = vpack.c.b16 %v51, %v50
  %vm56 = vcmask 261120
  %v58 = vsel %vm56, %v43, 0
  %60 = vmatprep.subr.bf16.mxu0 0
  %61 = vmatpush1.bf16.msra.mxu0 %v52
  %62 = vmatprep.subr.bf16.mxu0 0
  %63 = vmatpush1.bf16.msra.mxu0 %v53
  %64 = vmatprep.subr.bf16.mxu0 0
  %65 = vmatpush1.bf16.msra.mxu0 0
  %66 = vmatprep.subr.bf16.mxu0 0
  %67 = vmatpush1.bf16.msra.mxu0 0
  %68 = vmatprep.subr.bf16.mxu0 0
  %69 = vmatpush1.bf16.msra.mxu0 0
  %70 = vmatprep.subr.bf16.mxu0 0
  %71 = vmatpush1.bf16.msra.mxu0 0
  %72 = vmatprep.subr.bf16.mxu0 0
  %73 = vmatpush1.bf16.msra.mxu0 0
  %74 = vmatprep.subr.bf16.mxu0 0
  %75 = vmatpush1.bf16.msra.mxu0 0
  %76 = vmatprep.subr.bf16.mxu0 0
  %77 = vmatpush1.bf16.msra.mxu0 0
  %78 = vmatprep.subr.bf16.mxu0 0
  %79 = vmatpush1.bf16.msra.mxu0 0
  %80 = vmatprep.subr.bf16.mxu0 0
  %81 = vmatpush1.bf16.msra.mxu0 0
  %82 = vmatprep.subr.bf16.mxu0 0
  %83 = vmatpush1.bf16.msra.mxu0 0
  %84 = vmatprep.subr.bf16.mxu0 0
  %85 = vmatpush1.bf16.msra.mxu0 0
  %86 = vmatprep.subr.bf16.mxu0 0
  %87 = vmatpush1.bf16.msra.mxu0 0
  %88 = vmatprep.subr.bf16.mxu0 0
  %89 = vmatpush1.bf16.msra.mxu0 0
  %90 = vmatprep.subr.bf16.mxu0 0
  %91 = vmatpush1.bf16.msra.mxu0 0
  %92 = vmatprep.mubr.bf16.mxu0 0
  %93 = vmatmul.mubr.bf16.gmra.mrb[0].mxu0 %v58
  %v94 = vpop.f32.mrb[0].mxu0
  %v95 = vadd.f32 0.0, %v94
  %v96 = vpop.f32.mrb[0].mxu0
  %v97 = vpop.f32.mrb[0].mxu0
  %v98 = vadd.f32 0.0, %v97
  %v99 = vpop.f32.mrb[0].mxu0
  %100 = vdwg.mxu0
  %v101 = vadd.f32 %v31, %v95
  %v102 = vadd.f32 %v32, %v98
  %103 = vst.msk [vmem:[#allocation2] sm:$0xff] %vm56, %v101
  %104 = vst.msk [vmem:[#allocation2 + $0x8] sm:$0xff] %vm56, %v102
  // Predicated region
  $region30: #{forward.14} parent=0 // pred_check
    %p105 = pneg %p24
  $region31: #{forward.14} parent=0 // pred_check_branch
    %107 = sbr.rel (%p105) target = $region33
  $region32: #{forward.14} parent=0 // pred_region
    %v108 = vld [vmem:[#allocation2] sm:$0xff]
    %v109 = vld [vmem:[#allocation2 + $0x8] sm:$0xff]
    %v110 = vld [vmem:[%s2] sm:$0x1]
    %v112 = vlaneseq
    %v113 = vshrl.u32 %v112, 7
    %v114 = vsub.s32 0, %v113
    %v115 = vrot.slane %v110, %v114
    %v117 = vadd.f32 %v108, %v115
    %v118 = vadd.f32 %v109, %v115
    %v119 = vld [vmem:[%s3] sm:$0xf]
    %v120 = vld [vmem:[%s3 + $0x4] sm:$0xf]
    %v121 = vunpack.c.l.bf16 %v119
    %v122 = vunpack.c.l.bf16 %v120
    %v123 = vadd.f32 %v117, %v121
    %v124 = vadd.f32 %v118, %v122
    %v125 = vld [vmem:[%s4] sm:$0x1]
    %v126 = vld [vmem:[%s5] sm:$0x1]
    %v127 = vsel %vm56, %v123, 0.0
    %128 = vadd.xlane.f32.xlu0 %v127
    %v129 = vpop.xlane.xlu0 %128
    %v130 = vsel %vm56, %v124, 0.0
    %131 = vadd.xlane.f32.xlu0 %v130
    %v132 = vpop.xlane.xlu0 %131
    %v133 = vrcp.pop 32.0
    %v134 = vmul.f32 %v129, %v133
    %v135 = vmul.f32 %v132, %v133
    %v136 = vsub.f32 %v123, %v134
    %v137 = vsub.f32 %v124, %v135
    %v138 = vmul.f32 %v136, %v136
    %v139 = vmul.f32 %v137, %v137
    %v140 = vsel %vm56, %v138, 0.0
    %141 = vadd.xlane.f32.xlu0 %v140
    %v142 = vpop.xlane.xlu0 %141
    %v143 = vsel %vm56, %v139, 0.0
    %144 = vadd.xlane.f32.xlu0 %v143
    %v145 = vpop.xlane.xlu0 %144
    %v146 = vmul.f32 %v142, %v133
    %v147 = vmul.f32 %v145, %v133
    %v148 = vadd.f32 %v146, 1e-05
    %v149 = vadd.f32 %v147, 1e-05
    %v150 = vrsqrt.pop %v148
    %v151 = vrsqrt.pop %v149
    %v152 = vmul.f32 %v136, %v150
    %v153 = vmul.f32 %v137, %v151
    %v155 = vlaneseq
    %v156 = vshrl.u32 %v155, 7
    %v157 = vsub.s32 0, %v156
    %v158 = vrot.slane %v125, %v157
    %v160 = vmul.f32 %v152, %v158
    %v161 = vmul.f32 %v153, %v158
    %v163 = vlaneseq
    %v164 = vshrl.u32 %v163, 7
    %v165 = vsub.s32 0, %v164
    %v166 = vrot.slane %v126, %v165
    %v168 = vadd.f32 %v160, %v166
    %v169 = vadd.f32 %v161, %v166
    %v170 = vpack.c.bf16 %v169, %v168
    %v172 = vunpack.c.l.b16 %v170
    %v173 = vunpack.c.h.b16 %v170
    %v174 = vpack.c.b16 %v172, %v172
    %v175 = vpack.c.b16 %v173, %v173
    %vm178 = vcmask 257024
    %179 = vst.msk [vmem:[%s6] sm:$0xf] %vm178, %v174
    %180 = vst.msk [vmem:[%s6 + $0x4] sm:$0xf] %vm178, %v175
  $region33: #{forward.14} parent=0 // pred_fallthru
    _
  // Predicated region
  $region34: #{forward.14} parent=0 // pred_check
    _
  $region35: #{forward.14} parent=0 // pred_check_branch
    %182 = sbr.rel (0) target = $region37
  $region36: #{forward.14} parent=0 // pred_region
    _
  $region37: #{forward.14} parent=0 // pred_fallthru
    _
  // Predicated region
  $region38: #{forward.14} parent=0 // pred_check
    _
  $region39: #{forward.14} parent=0 // pred_check_branch
    %184 = sbr.rel (0) target = $region41
  $region40: #{forward.14} parent=0 // pred_region
    _
  $region41: #{forward.14} parent=0 // pred_fallthru
    _

// kernel: forward.22
$region0: #{forward.22}
  #allocation0 [shape = 'u32[]', space=smem, size = 0x4, offset = 0x4, fixed_abs, tag = 'smem constant byte address 0x4 - core index']
  #allocation1 [shape = 'u32[144,128]{1,0:T(1,128)}', space=vmem, size = 0x12000, scoped, tag = 'internal scratch']
  %s0 = inlined_call_operand.vmem [shape: bf16[16,32], index: 0, kind: input, shape index: {}]
  %s1 = inlined_call_operand.vmem [shape: f32[1,32], index: 1, kind: input, shape index: {}]
  %s2 = inlined_call_operand.vmem [shape: f32[1,32], index: 2, kind: input, shape index: {}]
  %s3 = inlined_call_operand.vmem [shape: bf16[16,32], index: 3, kind: output, shape index: {}]
  %s4 = sld [smem:[#allocation0]]
  $region22: #{forward.22} parent=0
    _
  %s6 = ssub.s32 1, %s4
  %s7 = scalar_select 0, %s6, %s4
  // Predicated region
  $region2: #{forward.22} parent=0 // pred_check
    _
  $region3: #{forward.22} parent=0 // pred_check_branch
    %9 = sbr.rel (0) target = $region5
  $region4: #{forward.22} parent=0 // pred_region
    _
  $region5: #{forward.22} parent=0 // pred_fallthru
    _
  // Predicated region
  $region6: #{forward.22} parent=0 // pred_check
    _
  $region7: #{forward.22} parent=0 // pred_check_branch
    %11 = sbr.rel (0) target = $region9
  $region8: #{forward.22} parent=0 // pred_region
    _
  $region9: #{forward.22} parent=0 // pred_fallthru
    _
  // Predicated region
  $region10: #{forward.22} parent=0 // pred_check
    _
  $region11: #{forward.22} parent=0 // pred_check_branch
    %13 = sbr.rel (0) target = $region13
  $region12: #{forward.22} parent=0 // pred_region
    _
  $region13: #{forward.22} parent=0 // pred_fallthru
    _
  %v14 = vld [vmem:[%s0] sm:$0xf]
  %v15 = vld [vmem:[%s0 + $0x4] sm:$0xf]
  %v16 = vunpack.c.l.bf16 %v14
  %v17 = vunpack.c.l.bf16 %v15
  %v18 = vld [vmem:[%s1] sm:$0x1]
  %v19 = vld [vmem:[%s2] sm:$0x1]
  %vm20 = vcmask 261120
  %v21 = vsel %vm20, %v16, 0.0
  %22 = vadd.xlane.f32.xlu0 %v21
  %v23 = vpop.xlane.xlu0 %22
  %v24 = vsel %vm20, %v17, 0.0
  %25 = vadd.xlane.f32.xlu0 %v24
  %v26 = vpop.xlane.xlu0 %25
  %v27 = vrcp.pop 32.0
  %v28 = vmul.f32 %v23, %v27
  %v29 = vmul.f32 %v26, %v27
  %v30 = vsub.f32 %v16, %v28
  %v31 = vsub.f32 %v17, %v29
  %v32 = vmul.f32 %v30, %v30
  %v33 = vmul.f32 %v31, %v31
  %v34 = vsel %vm20, %v32, 0.0
  %35 = vadd.xlane.f32.xlu0 %v34
  %v36 = vpop.xlane.xlu0 %35
  %v37 = vsel %vm20, %v33, 0.0
  %38 = vadd.xlane.f32.xlu0 %v37
  %v39 = vpop.xlane.xlu0 %38
  %v40 = vmul.f32 %v36, %v27
  %v41 = vmul.f32 %v39, %v27
  %v42 = vadd.f32 %v40, 1e-05
  %v43 = vadd.f32 %v41, 1e-05
  %v44 = vrsqrt.pop %v42
  %v45 = vrsqrt.pop %v43
  %v46 = vmul.f32 %v30, %v44
  %v47 = vmul.f32 %v31, %v45
  %v49 = vlaneseq
  %v50 = vshrl.u32 %v49, 7
  %v51 = vsub.s32 0, %v50
  %v52 = vrot.slane %v18, %v51
  %v54 = vmul.f32 %v46, %v52
  %v55 = vmul.f32 %v47, %v52
  %v57 = vlaneseq
  %v58 = vshrl.u32 %v57, 7
  %v59 = vsub.s32 0, %v58
  %v60 = vrot.slane %v19, %v59
  %v62 = vadd.f32 %v54, %v60
  %v63 = vadd.f32 %v55, %v60
  %v64 = vpack.c.bf16 %v63, %v62
  %v66 = vunpack.c.l.b16 %v64
  %v67 = vunpack.c.h.b16 %v64
  %v68 = vpack.c.b16 %v66, %v66
  %v69 = vpack.c.b16 %v67, %v67
  %vm72 = vcmask 257024
  %73 = vst.msk [vmem:[%s3] sm:$0xf] %vm72, %v68
  %74 = vst.msk [vmem:[%s3 + $0x4] sm:$0xf] %vm72, %v69
  // Predicated region
  $region14: #{forward.22} parent=0 // pred_check
    _
  $region15: #{forward.22} parent=0 // pred_check_branch
    %76 = sbr.rel (0) target = $region17
  $region16: #{forward.22} parent=0 // pred_region
    _
  $region17: #{forward.22} parent=0 // pred_fallthru
    _
  // Predicated region
  $region18: #{forward.22} parent=0 // pred_check
    _
  $region19: #{forward.22} parent=0 // pred_check_branch
    %78 = sbr.rel (0) target = $region21
  $region20: #{forward.22} parent=0 // pred_region
    _
  $region21: #{forward.22} parent=0 // pred_fallthru
    _

// kernel: forward.23
$region0: #{forward.23}
  #allocation0 [shape = 'u32[]', space=smem, size = 0x4, offset = 0x4, fixed_abs, tag = 'smem constant byte address 0x4 - core index']
  #allocation1 [shape = 'u32[144,128]{1,0:T(1,128)}', space=vmem, size = 0x12000, scoped, tag = 'internal scratch']
  #allocation2 [shape = 'f32[16,64]{1,0:T(8,128)}', space=vmem, size = 0x2000, scoped, tag = 'scratch operand']
  %s0 = inlined_call_operand.vmem [shape: bf16[16,32], index: 0, kind: input, shape index: {}]
  %s1 = inlined_call_operand.vmem [shape: bf16[32,64], index: 1, kind: input, shape index: {}]
  %s2 = inlined_call_operand.vmem [shape: f32[1,64], index: 2, kind: input, shape index: {}]
  %s3 = inlined_call_operand.hbm [shape: bf16[16,64], index: 3, kind: output, shape index: {}]
  %s4 = sld [smem:[#allocation0]]
  $region30: #{forward.23} parent=0
    _
  %s6 = ssub.s32 1, %s4
  %s7 = scalar_select 0, %s6, %s4
  $region1: #{forward.23} parent=0
    #allocation3 [shape = 'u8[4096]{0}', space=vmem, size = 0x1000, scoped, tag = 'output window, operand 0, single buffered']
    #allocation4 [shape = 's32[1]{0}', space=sflag, size = 0x4, scoped, tag = 'scoped memory for forward.23']
    %8 = vsyncpa [#allocation4], 0
    // Predicated region
    $region2: #{forward.23} parent=1 // pred_check
      _
    $region3: #{forward.23} parent=1 // pred_check_branch
      %10 = sbr.rel (0) target = $region5
    $region4: #{forward.23} parent=1 // pred_region
      _
    $region5: #{forward.23} parent=1 // pred_fallthru
      _
    // Predicated region
    $region6: #{forward.23} parent=1 // pred_check
      _
    $region7: #{forward.23} parent=1 // pred_check_branch
      %12 = sbr.rel (0) target = $region9
    $region8: #{forward.23} parent=1 // pred_region
      _
    $region9: #{forward.23} parent=1 // pred_fallthru
      _
    // Predicated region
    $region10: #{forward.23} parent=1 // pred_check
      _
    $region11: #{forward.23} parent=1 // pred_check_branch
      %14 = sbr.rel (0) target = $region13
    $region12: #{forward.23} parent=1 // pred_region
      _
    $region13: #{forward.23} parent=1 // pred_fallthru
      _
    %p16 = scmp.eq.s32.totalorder 0, 0
    // Predicated region
    $region14: #{forward.23} parent=1 // pred_check
      %p17 = pneg %p16
    $region15: #{forward.23} parent=1 // pred_check_branch
      %19 = sbr.rel (%p17) target = $region17
    $region16: #{forward.23} parent=1 // pred_region
      %vm20 = vcmask 523264
      %21 = vst.msk [vmem:[#allocation2] sm:$0xff] %vm20, 0.0
      %22 = vst.msk [vmem:[#allocation2 + $0x8] sm:$0xff] %vm20, 0.0
    $region17: #{forward.23} parent=1 // pred_fallthru
      _
    %v23 = vld [vmem:[#allocation2] sm:$0xff]
    %v24 = vld [vmem:[#allocation2 + $0x8] sm:$0xff]
    %v25 = vld [vmem:[%s0] sm:$0xf]
    %v26 = vld [vmem:[%s0 + $0x4] sm:$0xf]
    %v27 = vld [vmem:[%s1] sm:$0xf]
    %v28 = vld [vmem:[%s1 + $0x4] sm:$0xf]
    %v29 = vld [vmem:[%s1 + $0x8] sm:$0xf]
    %v30 = vld [vmem:[%s1 + $0xc] sm:$0xf]
    %v33 = vunpack.c.l.b16 %v25
    %v34 = vunpack.c.l.b16 %v26
    %v35 = vpack.c.b16 %v34, %v33
    %v40 = vunpack.c.l.b16 %v27
    %v41 = vunpack.c.l.b16 %v28
    %v42 = vunpack.c.l.b16 %v29
    %v43 = vunpack.c.l.b16 %v30
    %v44 = vpack.c.b16 %v41, %v40
    %v45 = vpack.c.b16 %v43, %v42
    %vm48 = vcmask 261120
    %v50 = vsel %vm48, %v35, 0
    %52 = vmatprep.subr.bf16.mxu0 0
    %53 = vmatpush1.bf16.msra.mxu0 %v44
    %54 = vmatprep.subr.bf16.mxu0 0
    %55 = vmatpush1.bf16.msra.mxu0 %v45
    %56 = vmatprep.subr.bf16.mxu0 0
    %57 = vmatpush1.bf16.msra.mxu0 0
    %58 = vmatprep.subr.bf16.mxu0 0
    %59 = vmatpush1.bf16.msra.mxu0 0
    %60 = vmatprep.subr.bf16.mxu0 0
    %61 = vmatpush1.bf16.msra.mxu0 0
    %62 = vmatprep.subr.bf16.mxu0 0
    %63 = vmatpush1.bf16.msra.mxu0 0
    %64 = vmatprep.subr.bf16.mxu0 0
    %65 = vmatpush1.bf16.msra.mxu0 0
    %66 = vmatprep.subr.bf16.mxu0 0
    %67 = vmatpush1.bf16.msra.mxu0 0
    %68 = vmatprep.subr.bf16.mxu0 0
    %69 = vmatpush1.bf16.msra.mxu0 0
    %70 = vmatprep.subr.bf16.mxu0 0
    %71 = vmatpush1.bf16.msra.mxu0 0
    %72 = vmatprep.subr.bf16.mxu0 0
    %73 = vmatpush1.bf16.msra.mxu0 0
    %74 = vmatprep.subr.bf16.mxu0 0
    %75 = vmatpush1.bf16.msra.mxu0 0
    %76 = vmatprep.subr.bf16.mxu0 0
    %77 = vmatpush1.bf16.msra.mxu0 0
    %78 = vmatprep.subr.bf16.mxu0 0
    %79 = vmatpush1.bf16.msra.mxu0 0
    %80 = vmatprep.subr.bf16.mxu0 0
    %81 = vmatpush1.bf16.msra.mxu0 0
    %82 = vmatprep.subr.bf16.mxu0 0
    %83 = vmatpush1.bf16.msra.mxu0 0
    %84 = vmatprep.mubr.bf16.mxu0 0
    %85 = vmatmul.mubr.bf16.gmra.mrb[0].mxu0 %v50
    %v86 = vpop.f32.mrb[0].mxu0
    %v87 = vadd.f32 0.0, %v86
    %v88 = vpop.f32.mrb[0].mxu0
    %v89 = vpop.f32.mrb[0].mxu0
    %v90 = vadd.f32 0.0, %v89
    %v91 = vpop.f32.mrb[0].mxu0
    %92 = vdwg.mxu0
    %v93 = vadd.f32 %v23, %v87
    %v94 = vadd.f32 %v24, %v90
    %vm95 = vcmask 523264
    %96 = vst.msk [vmem:[#allocation2] sm:$0xff] %vm95, %v93
    %97 = vst.msk [vmem:[#allocation2 + $0x8] sm:$0xff] %vm95, %v94
    // Predicated region
    $region18: #{forward.23} parent=1 // pred_check
      %p98 = pneg %p16
    $region19: #{forward.23} parent=1 // pred_check_branch
      %100 = sbr.rel (%p98) target = $region21
    $region20: #{forward.23} parent=1 // pred_region
      %v101 = vld [vmem:[#allocation2] sm:$0xff]
      %v102 = vld [vmem:[#allocation2 + $0x8] sm:$0xff]
      %v103 = vld [vmem:[%s2] sm:$0x1]
      %v105 = vlaneseq
      %v106 = vshrl.u32 %v105, 7
      %v107 = vsub.s32 0, %v106
      %v108 = vrot.slane %v103, %v107
      %v110 = vadd.f32 %v101, %v108
      %v111 = vadd.f32 %v102, %v108
      %v112 = vpack.c.bf16 %v111, %v110
      %v114 = vunpack.c.l.b16 %v112
      %v115 = vunpack.c.h.b16 %v112
      %v116 = vpack.c.b16 %v114, %v114
      %v117 = vpack.c.b16 %v115, %v115
      %vm120 = vcmask 519168
      %121 = vst.msk [vmem:[#allocation3] sm:$0xf] %vm120, %v116
      %122 = vst.msk [vmem:[#allocation3 + $0x4] sm:$0xf] %vm120, %v117
    $region21: #{forward.23} parent=1 // pred_fallthru
      _
    // Predicated region
    $region22: #{forward.23} parent=1 // pred_check
      _
    $region23: #{forward.23} parent=1 // pred_check_branch
      %124 = sbr.rel (0) target = $region25
    $region24: #{forward.23} parent=1 // pred_region
      %s126 = ssub.s32 128, 128
      %127 = vsyncadd [#allocation4], %s126
      %s128 = sshll.u32 [#allocation3], 4
      %s129 = int_to_ptr.vmem [resolvable:$true] %s128
      %134 = dma.vmem_to_hbm [thread:$0]  %s129, 128, %s3, [#allocation4], 64, 64, 4
    $region25: #{forward.23} parent=1 // pred_fallthru
      _
    // Predicated region
    $region26: #{forward.23} parent=1 // pred_check
      _
    $region27: #{forward.23} parent=1 // pred_check_branch
      %136 = sbr.rel (0) target = $region29
    $region28: #{forward.23} parent=1 // pred_region
      %137 = dma.done [#allocation4], 128
    $region29: #{forward.23} parent=1 // pred_fallthru
      _
    %138 = vsyncpa [#allocation4], 1

// kernel: forward.16
$region0: #{forward.16}
  #allocation0 [shape = 'u32[]', space=smem, size = 0x4, offset = 0x4, fixed_abs, tag = 'smem constant byte address 0x4 - core index']
  #allocation1 [shape = 'u32[144,128]{1,0:T(1,128)}', space=vmem, size = 0x12000, scoped, tag = 'internal scratch']
  #allocation2 [shape = 'f32[16,32]{1,0:T(8,128)}', space=vmem, size = 0x2000, scoped, tag = 'scratch operand']
  %s0 = inlined_call_operand.vmem [shape: bf16[16,128], index: 0, kind: input, shape index: {}]
  %s1 = inlined_call_operand.vmem [shape: bf16[128,32], index: 1, kind: input, shape index: {}]
  %s2 = inlined_call_operand.vmem [shape: f32[1,32], index: 2, kind: input, shape index: {}]
  %s3 = inlined_call_operand.vmem [shape: bf16[16,32], index: 3, kind: input, shape index: {}]
  %s4 = inlined_call_operand.vmem [shape: f32[1,32], index: 4, kind: input, shape index: {}]
  %s5 = inlined_call_operand.vmem [shape: f32[1,32], index: 5, kind: input, shape index: {}]
  %s6 = inlined_call_operand.vmem [shape: bf16[16,32], index: 6, kind: output, shape index: {}]
  %s7 = sld [smem:[#allocation0]]
  $region42: #{forward.16} parent=0
    _
  %s9 = ssub.s32 1, %s7
  %s10 = scalar_select 0, %s9, %s7
  // Predicated region
  $region2: #{forward.16} parent=0 // pred_check
    _
  $region3: #{forward.16} parent=0 // pred_check_branch
    %12 = sbr.rel (0) target = $region5
  $region4: #{forward.16} parent=0 // pred_region
    _
  $region5: #{forward.16} parent=0 // pred_fallthru
    _
  // Predicated region
  $region6: #{forward.16} parent=0 // pred_check
    _
  $region7: #{forward.16} parent=0 // pred_check_branch
    %14 = sbr.rel (0) target = $region9
  $region8: #{forward.16} parent=0 // pred_region
    _
  $region9: #{forward.16} parent=0 // pred_fallthru
    _
  // Predicated region
  $region10: #{forward.16} parent=0 // pred_check
    _
  $region11: #{forward.16} parent=0 // pred_check_branch
    %16 = sbr.rel (0) target = $region13
  $region12: #{forward.16} parent=0 // pred_region
    _
  $region13: #{forward.16} parent=0 // pred_fallthru
    _
  // Predicated region
  $region14: #{forward.16} parent=0 // pred_check
    _
  $region15: #{forward.16} parent=0 // pred_check_branch
    %18 = sbr.rel (0) target = $region17
  $region16: #{forward.16} parent=0 // pred_region
    _
  $region17: #{forward.16} parent=0 // pred_fallthru
    _
  // Predicated region
  $region18: #{forward.16} parent=0 // pred_check
    _
  $region19: #{forward.16} parent=0 // pred_check_branch
    %20 = sbr.rel (0) target = $region21
  $region20: #{forward.16} parent=0 // pred_region
    _
  $region21: #{forward.16} parent=0 // pred_fallthru
    _
  // Predicated region
  $region22: #{forward.16} parent=0 // pred_check
    _
  $region23: #{forward.16} parent=0 // pred_check_branch
    %22 = sbr.rel (0) target = $region25
  $region24: #{forward.16} parent=0 // pred_region
    _
  $region25: #{forward.16} parent=0 // pred_fallthru
    _
  %p24 = scmp.eq.s32.totalorder 0, 0
  // Predicated region
  $region26: #{forward.16} parent=0 // pred_check
    %p25 = pneg %p24
  $region27: #{forward.16} parent=0 // pred_check_branch
    %27 = sbr.rel (%p25) target = $region29
  $region28: #{forward.16} parent=0 // pred_region
    %vm28 = vcmask 261120
    %29 = vst.msk [vmem:[#allocation2] sm:$0xff] %vm28, 0.0
    %30 = vst.msk [vmem:[#allocation2 + $0x8] sm:$0xff] %vm28, 0.0
  $region29: #{forward.16} parent=0 // pred_fallthru
    _
  %v31 = vld [vmem:[#allocation2] sm:$0xff]
  %v32 = vld [vmem:[#allocation2 + $0x8] sm:$0xff]
  %v33 = vld [vmem:[%s0] sm:$0xf]
  %v34 = vld [vmem:[%s0 + $0x4] sm:$0xf]
  %v35 = vld [vmem:[%s1] sm:$0xf]
  %v36 = vld [vmem:[%s1 + $0x4] sm:$0xf]
  %v37 = vld [vmem:[%s1 + $0x8] sm:$0xf]
  %v38 = vld [vmem:[%s1 + $0xc] sm:$0xf]
  %v39 = vld [vmem:[%s1 + $0x10] sm:$0xf]
  %v40 = vld [vmem:[%s1 + $0x14] sm:$0xf]
  %v41 = vld [vmem:[%s1 + $0x18] sm:$0xf]
  %v42 = vld [vmem:[%s1 + $0x1c] sm:$0xf]
  %v43 = vld [vmem:[%s1 + $0x20] sm:$0xf]
  %v44 = vld [vmem:[%s1 + $0x24] sm:$0xf]
  %v45 = vld [vmem:[%s1 + $0x28] sm:$0xf]
  %v46 = vld [vmem:[%s1 + $0x2c] sm:$0xf]
  %v47 = vld [vmem:[%s1 + $0x30] sm:$0xf]
  %v48 = vld [vmem:[%s1 + $0x34] sm:$0xf]
  %v49 = vld [vmem:[%s1 + $0x38] sm:$0xf]
  %v50 = vld [vmem:[%s1 + $0x3c] sm:$0xf]
  %v53 = vunpack.c.l.b16 %v33
  %v54 = vunpack.c.l.b16 %v34
  %v55 = vpack.c.b16 %v54, %v53
  %v73 = vunpack.c.l.b16 %v35
  %v74 = vunpack.c.l.b16 %v36
  %v75 = vunpack.c.l.b16 %v37
  %v76 = vunpack.c.l.b16 %v38
  %v77 = vunpack.c.l.b16 %v39
  %v78 = vunpack.c.l.b16 %v40
  %v79 = vunpack.c.l.b16 %v41
  %v80 = vunpack.c.l.b16 %v42
  %v81 = vunpack.c.l.b16 %v43
  %v82 = vunpack.c.l.b16 %v44
  %v83 = vunpack.c.l.b16 %v45
  %v84 = vunpack.c.l.b16 %v46
  %v85 = vunpack.c.l.b16 %v47
  %v86 = vunpack.c.l.b16 %v48
  %v87 = vunpack.c.l.b16 %v49
  %v88 = vunpack.c.l.b16 %v50
  %v89 = vpack.c.b16 %v74, %v73
  %v90 = vpack.c.b16 %v76, %v75
  %v91 = vpack.c.b16 %v78, %v77
  %v92 = vpack.c.b16 %v80, %v79
  %v93 = vpack.c.b16 %v82, %v81
  %v94 = vpack.c.b16 %v84, %v83
  %v95 = vpack.c.b16 %v86, %v85
  %v96 = vpack.c.b16 %v88, %v87
  %105 = vmatprep.subr.bf16.mxu0 0
  %106 = vmatpush1.bf16.msra.mxu0 %v89
  %107 = vmatprep.subr.bf16.mxu0 0
  %108 = vmatpush1.bf16.msra.mxu0 %v90
  %109 = vmatprep.subr.bf16.mxu0 0
  %110 = vmatpush1.bf16.msra.mxu0 %v91
  %111 = vmatprep.subr.bf16.mxu0 0
  %112 = vmatpush1.bf16.msra.mxu0 %v92
  %113 = vmatprep.subr.bf16.mxu0 0
  %114 = vmatpush1.bf16.msra.mxu0 %v93
  %115 = vmatprep.subr.bf16.mxu0 0
  %116 = vmatpush1.bf16.msra.mxu0 %v94
  %117 = vmatprep.subr.bf16.mxu0 0
  %118 = vmatpush1.bf16.msra.mxu0 %v95
  %119 = vmatprep.subr.bf16.mxu0 0
  %120 = vmatpush1.bf16.msra.mxu0 %v96
  %121 = vmatprep.subr.bf16.mxu0 0
  %122 = vmatpush1.bf16.msra.mxu0 0
  %123 = vmatprep.subr.bf16.mxu0 0
  %124 = vmatpush1.bf16.msra.mxu0 0
  %125 = vmatprep.subr.bf16.mxu0 0
  %126 = vmatpush1.bf16.msra.mxu0 0
  %127 = vmatprep.subr.bf16.mxu0 0
  %128 = vmatpush1.bf16.msra.mxu0 0
  %129 = vmatprep.subr.bf16.mxu0 0
  %130 = vmatpush1.bf16.msra.mxu0 0
  %131 = vmatprep.subr.bf16.mxu0 0
  %132 = vmatpush1.bf16.msra.mxu0 0
  %133 = vmatprep.subr.bf16.mxu0 0
  %134 = vmatpush1.bf16.msra.mxu0 0
  %135 = vmatprep.subr.bf16.mxu0 0
  %136 = vmatpush1.bf16.msra.mxu0 0
  %137 = vmatprep.mubr.bf16.mxu0 0
  %138 = vmatmul.mubr.bf16.gmra.mrb[0].mxu0 %v55
  %v139 = vpop.f32.mrb[0].mxu0
  %v140 = vadd.f32 0.0, %v139
  %v141 = vpop.f32.mrb[0].mxu0
  %v142 = vpop.f32.mrb[0].mxu0
  %v143 = vadd.f32 0.0, %v142
  %v144 = vpop.f32.mrb[0].mxu0
  %145 = vdwg.mxu0
  %v146 = vadd.f32 %v31, %v140
  %v147 = vadd.f32 %v32, %v143
  %vm148 = vcmask 261120
  %149 = vst.msk [vmem:[#allocation2] sm:$0xff] %vm148, %v146
  %150 = vst.msk [vmem:[#allocation2 + $0x8] sm:$0xff] %vm148, %v147
  // Predicated region
  $region30: #{forward.16} parent=0 // pred_check
    %p151 = pneg %p24
  $region31: #{forward.16} parent=0 // pred_check_branch
    %153 = sbr.rel (%p151) target = $region33
  $region32: #{forward.16} parent=0 // pred_region
    %v154 = vld [vmem:[#allocation2] sm:$0xff]
    %v155 = vld [vmem:[#allocation2 + $0x8] sm:$0xff]
    %v156 = vld [vmem:[%s2] sm:$0x1]
    %v158 = vlaneseq
    %v159 = vshrl.u32 %v158, 7
    %v160 = vsub.s32 0, %v159
    %v161 = vrot.slane %v156, %v160
    %v163 = vadd.f32 %v154, %v161
    %v164 = vadd.f32 %v155, %v161
    %v165 = vld [vmem:[%s3] sm:$0xf]
    %v166 = vld [vmem:[%s3 + $0x4] sm:$0xf]
    %v167 = vunpack.c.l.bf16 %v165
    %v168 = vunpack.c.l.bf16 %v166
    %v169 = vadd.f32 %v163, %v167
    %v170 = vadd.f32 %v164, %v168
    %v171 = vld [vmem:[%s4] sm:$0x1]
    %v172 = vld [vmem:[%s5] sm:$0x1]
    %v173 = vsel %vm148, %v169, 0.0
    %174 = vadd.xlane.f32.xlu0 %v173
    %v175 = vpop.xlane.xlu0 %174
    %v176 = vsel %vm148, %v170, 0.0
    %177 = vadd.xlane.f32.xlu0 %v176
    %v178 = vpop.xlane.xlu0 %177
    %v179 = vrcp.pop 32.0
    %v180 = vmul.f32 %v175, %v179
    %v181 = vmul.f32 %v178, %v179
    %v182 = vsub.f32 %v169, %v180
    %v183 = vsub.f32 %v170, %v181
    %v184 = vmul.f32 %v182, %v182
    %v185 = vmul.f32 %v183, %v183
    %v186 = vsel %vm148, %v184, 0.0
    %187 = vadd.xlane.f32.xlu0 %v186
    %v188 = vpop.xlane.xlu0 %187
    %v189 = vsel %vm148, %v185, 0.0
    %190 = vadd.xlane.f32.xlu0 %v189
    %v191 = vpop.xlane.xlu0 %190
    %v192 = vmul.f32 %v188, %v179
    %v193 = vmul.f32 %v191, %v179
    %v194 = vadd.f32 %v192, 1e-05
    %v195 = vadd.f32 %v193, 1e-05
    %v196 = vrsqrt.pop %v194
    %v197 = vrsqrt.pop %v195
    %v198 = vmul.f32 %v182, %v196
    %v199 = vmul.f32 %v183, %v197
    %v201 = vlaneseq
    %v202 = vshrl.u32 %v201, 7
    %v203 = vsub.s32 0, %v202
    %v204 = vrot.slane %v171, %v203
    %v206 = vmul.f32 %v198, %v204
    %v207 = vmul.f32 %v199, %v204
    %v209 = vlaneseq
    %v210 = vshrl.u32 %v209, 7
    %v211 = vsub.s32 0, %v210
    %v212 = vrot.slane %v172, %v211
    %v214 = vadd.f32 %v206, %v212
    %v215 = vadd.f32 %v207, %v212
    %v216 = vpack.c.bf16 %v215, %v214
    %v218 = vunpack.c.l.b16 %v216
    %v219 = vunpack.c.h.b16 %v216
    %v220 = vpack.c.b16 %v218, %v218
    %v221 = vpack.c.b16 %v219, %v219
    %vm224 = vcmask 257024
    %225 = vst.msk [vmem:[%s6] sm:$0xf] %vm224, %v220
    %226 = vst.msk [vmem:[%s6 + $0x4] sm:$0xf] %vm224, %v221
  $region33: #{forward.16} parent=0 // pred_fallthru
    _
  // Predicated region
  $region34: #{forward.16} parent=0 // pred_check
    _
  $region35: #{forward.16} parent=0 // pred_check_branch
    %228 = sbr.rel (0) target = $region37
  $region36: #{forward.16} parent=0 // pred_region
    _
  $region37: #{forward.16} parent=0 // pred_fallthru
    _
  // Predicated region
  $region38: #{forward.16} parent=0 // pred_check
    _
  $region39: #{forward.16} parent=0 // pred_check_branch
    %230 = sbr.rel (0) target = $region41
  $region40: #{forward.16} parent=0 // pred_region
    _
  $region41: #{forward.16} parent=0 // pred_fallthru
    _

</llo_original>
